<compile_context>
chip_gen: v7x
topology: tpu7x:2x2x1
jax: 0.10.0
libtpu: 0.0.40
codegen_flags: <defaults>
</compile_context>

<pallas_src>
import functools

import jax
import jax.numpy as jnp
from jax.experimental import pallas as pl
from jax.experimental.pallas import tpu as pltpu
import numpy as np


def lstm_head_kernel(x_ref, wih_ref, whh_ref, b_ref, h0_ref, c0_ref,
                     wlin_ref, blin_ref, out_ref, *, T, B, Hp):
    # x_ref:    (T*B, I)    time-major, flattened input
    # wih_ref:  (I, 4*Hp)   concatenated per-gate input->hidden weights (i,f,g,o)
    # whh_ref:  (Hp, 4*Hp)  concatenated hidden->hidden weights
    # b_ref:    (1, 4*Hp)   combined bias (b_ih + b_hh), zero in padded lanes
    # h0_ref:   (B, Hp), c0_ref: (B, Hp)   zero in padded lanes
    # wlin_ref: (Hp, O), blin_ref: (1, O)
    # out_ref:  (B, O)

    # Hoisted input projection (+ bias): one well-shaped matmul ahead of the
    # serially-dependent recurrence.
    xw = (jnp.dot(x_ref[...], wih_ref[...], preferred_element_type=jnp.float32)
          + b_ref[...])                                     # (T*B, 4*Hp)

    whh = whh_ref[...]        # hoisted: loaded once, reused every step
    h = h0_ref[...]
    c = c0_ref[...]

    # Fully-unrolled recurrence: ONE fused MXU matmul per step, lane-aligned
    # gate slices, EUP sigmoid/tanh overlap the next step's issue.
    for t in range(T):
        gates = xw[t * B:(t + 1) * B, :] + jnp.dot(
            h, whh, preferred_element_type=jnp.float32)     # (B, 4*Hp)
        i_g = jax.nn.sigmoid(gates[:, 0 * Hp:1 * Hp])
        f_g = jax.nn.sigmoid(gates[:, 1 * Hp:2 * Hp])
        g_g = jnp.tanh(gates[:, 2 * Hp:3 * Hp])
        o_g = jax.nn.sigmoid(gates[:, 3 * Hp:4 * Hp])
        c = f_g * c + i_g * g_g
        h = o_g * jnp.tanh(c)

    # Linear head on the last hidden state (padded lanes of h are zero and
    # padded rows of wlin are zero, so padding contributes nothing).
    out_ref[...] = (jnp.dot(h, wlin_ref[...], preferred_element_type=jnp.float32)
                    + blin_ref[...]).astype(out_ref.dtype)


def baseline_lstm_forward(x, params):
    """x: (B, T, I) batch_first (PyTorch convention). Returns (B, O)."""
    B, T, I = x.shape
    Hp = params["whh"].shape[0]
    O = params["wlin"].shape[-1]

    # batch-first -> time-major, flatten (T, B) rows for the hoisted projection.
    x_tm = jnp.transpose(x, (1, 0, 2)).reshape(T * B, I)

    vmem = pl.BlockSpec(memory_space=pltpu.MemorySpace.VMEM)
    kernel = functools.partial(lstm_head_kernel, T=T, B=B, Hp=Hp)
    return pl.pallas_call(
        kernel,
        out_shape=jax.ShapeDtypeStruct((B, O), jnp.float32),
        in_specs=[vmem] * 8,
        out_specs=vmem,
    )(x_tm, params["wih"], params["whh"], params["b"],
      params["h0"], params["c0"], params["wlin"], params["blin"])


def init_params(key, input_size, hidden_size, output_size, batch_size, hp=128):
    """PyTorch-style init; returns (packed kernel params, raw reference params)."""
    ks = jax.random.split(key, 8)
    H, I, O, Hp = hidden_size, input_size, output_size, hp
    k_lstm = 1.0 / np.sqrt(H)
    k_lin = 1.0 / np.sqrt(H)

    # PyTorch-shaped raw parameters (gate order i, f, g, o)
    weight_ih = jax.random.uniform(ks[0], (4 * H, I), jnp.float32, -k_lstm, k_lstm)
    weight_hh = jax.random.uniform(ks[1], (4 * H, H), jnp.float32, -k_lstm, k_lstm)
    bias_ih = jax.random.uniform(ks[2], (4 * H,), jnp.float32, -k_lstm, k_lstm)
    bias_hh = jax.random.uniform(ks[3], (4 * H,), jnp.float32, -k_lstm, k_lstm)
    lin_w = jax.random.uniform(ks[4], (O, H), jnp.float32, -k_lin, k_lin)
    lin_b = jax.random.uniform(ks[5], (O,), jnp.float32, -k_lin, k_lin)
    h0 = jax.random.normal(ks[6], (1, batch_size, H), jnp.float32)
    c0 = jax.random.normal(ks[7], (1, batch_size, H), jnp.float32)

    raw = dict(weight_ih=weight_ih, weight_hh=weight_hh,
               bias_ih=bias_ih, bias_hh=bias_hh,
               lin_w=lin_w, lin_b=lin_b, h0=h0, c0=c0)

    # Pack: concatenate gates along N, pad each gate block to Hp=128 lanes.
    wih = jnp.zeros((I, 4 * Hp), jnp.float32)
    whh = jnp.zeros((Hp, 4 * Hp), jnp.float32)
    b = jnp.zeros((1, 4 * Hp), jnp.float32)
    for k in range(4):
        wih = wih.at[:, k * Hp:k * Hp + H].set(weight_ih[k * H:(k + 1) * H, :].T)
        whh = whh.at[:H, k * Hp:k * Hp + H].set(weight_hh[k * H:(k + 1) * H, :].T)
        b = b.at[0, k * Hp:k * Hp + H].set(
            bias_ih[k * H:(k + 1) * H] + bias_hh[k * H:(k + 1) * H])

    h0p = jnp.zeros((batch_size, Hp), jnp.float32).at[:, :H].set(h0[0])
    c0p = jnp.zeros((batch_size, Hp), jnp.float32).at[:, :H].set(c0[0])
    wlin = jnp.zeros((Hp, O), jnp.float32).at[:H, :].set(lin_w.T)
    blin = lin_b.reshape(1, O)

    kernel_params = dict(wih=wih, whh=whh, b=b, h0=h0p, c0=c0p,
                         wlin=wlin, blin=blin)
    return kernel_params, raw


def reference_forward(x, raw):
    """Pure-JAX reference from the raw PyTorch-shaped params."""
    B, T, I = x.shape
    H = raw["weight_hh"].shape[1]
    h = raw["h0"][0]
    c = raw["c0"][0]
    w_ih, w_hh = raw["weight_ih"], raw["weight_hh"]
    b = raw["bias_ih"] + raw["bias_hh"]
    for t in range(T):
        g = x[:, t, :] @ w_ih.T + h @ w_hh.T + b
        i_g = jax.nn.sigmoid(g[:, 0 * H:1 * H])
        f_g = jax.nn.sigmoid(g[:, 1 * H:2 * H])
        g_g = jnp.tanh(g[:, 2 * H:3 * H])
        o_g = jax.nn.sigmoid(g[:, 3 * H:4 * H])
        c = f_g * c + i_g * g_g
        h = o_g * jnp.tanh(c)
    return h @ raw["lin_w"].T + raw["lin_b"]


if __name__ == "__main__":
    input_size = 20
    hidden_size = 15
    output_size = 3
    batch_size = 1
    seq_len = 8

    key = jax.random.PRNGKey(0)
    k_x, k_p = jax.random.split(key)
    x = jax.random.normal(k_x, (batch_size, seq_len, input_size), jnp.float32)
    kernel_params, raw_params = init_params(
        k_p, input_size, hidden_size, output_size, batch_size)

    out = baseline_lstm_forward(x, kernel_params)
    out = jax.block_until_ready(out)

    ref = reference_forward(x, raw_params)
    np.testing.assert_allclose(np.asarray(out), np.asarray(ref),
                               rtol=1e-5, atol=1e-5)

    print("KERNEL_OK")
</pallas_src>

<mosaic_0001>
module attributes {stable_mosaic.version = 11 : i64} {
  func.func @lstm_head_kernel(%arg0: memref<8x20xf32, #tpu.memory_space<vmem>>, %arg1: memref<20x512xf32, #tpu.memory_space<vmem>>, %arg2: memref<128x512xf32, #tpu.memory_space<vmem>>, %arg3: memref<1x512xf32, #tpu.memory_space<vmem>>, %arg4: memref<1x128xf32, #tpu.memory_space<vmem>>, %arg5: memref<1x128xf32, #tpu.memory_space<vmem>>, %arg6: memref<128x3xf32, #tpu.memory_space<vmem>>, %arg7: memref<1x3xf32, #tpu.memory_space<vmem>>, %arg8: memref<1x3xf32, #tpu.memory_space<vmem>>) attributes {dimension_semantics = [], scalar_prefetch = 0 : i64, scratch_operands = 0 : i64, tpu.core_type = #tpu.core_type<tc>} {
    %c0 = arith.constant 0 : index
    %c0_0 = arith.constant 0 : index
    %0 = vector.load %arg0[%c0, %c0_0] : memref<8x20xf32, #tpu.memory_space<vmem>>, vector<8x20xf32>
    %c0_1 = arith.constant 0 : index
    %c0_2 = arith.constant 0 : index
    %1 = vector.load %arg1[%c0_1, %c0_2] : memref<20x512xf32, #tpu.memory_space<vmem>>, vector<20x512xf32>
    %cst = arith.constant dense<0.000000e+00> : vector<8x512xf32>
    %2 = tpu.matmul %0, %1, %cst {dimension_numbers = #tpu.dot_dimension_numbers<[1], [0], [0], [1], [0, 0, 1, 1], [], []>} : vector<8x20xf32>, vector<20x512xf32>, vector<8x512xf32> -> vector<8x512xf32>
    %c0_3 = arith.constant 0 : index
    %c0_4 = arith.constant 0 : index
    %3 = vector.load %arg3[%c0_3, %c0_4] : memref<1x512xf32, #tpu.memory_space<vmem>>, vector<1x512xf32>
    %4 = vector.broadcast %3 : vector<1x512xf32> to vector<8x512xf32>
    %5 = arith.addf %2, %4 : vector<8x512xf32>
    %c0_5 = arith.constant 0 : index
    %c0_6 = arith.constant 0 : index
    %6 = vector.load %arg2[%c0_5, %c0_6] : memref<128x512xf32, #tpu.memory_space<vmem>>, vector<128x512xf32>
    %c0_7 = arith.constant 0 : index
    %c0_8 = arith.constant 0 : index
    %7 = vector.load %arg4[%c0_7, %c0_8] : memref<1x128xf32, #tpu.memory_space<vmem>>, vector<1x128xf32>
    %c0_9 = arith.constant 0 : index
    %c0_10 = arith.constant 0 : index
    %8 = vector.load %arg5[%c0_9, %c0_10] : memref<1x128xf32, #tpu.memory_space<vmem>>, vector<1x128xf32>
    %9 = vector.extract_strided_slice %5 {offsets = [0, 0], sizes = [1, 512], strides = [1, 1]} : vector<8x512xf32> to vector<1x512xf32>
    %cst_11 = arith.constant dense<0.000000e+00> : vector<1x512xf32>
    %10 = tpu.matmul %7, %6, %cst_11 {dimension_numbers = #tpu.dot_dimension_numbers<[1], [0], [0], [1], [0, 0, 1, 1], [], []>} : vector<1x128xf32>, vector<128x512xf32>, vector<1x512xf32> -> vector<1x512xf32>
    %11 = arith.addf %9, %10 : vector<1x512xf32>
    %12 = vector.extract_strided_slice %11 {offsets = [0, 0], sizes = [1, 128], strides = [1, 1]} : vector<1x512xf32> to vector<1x128xf32>
    %13 = arith.negf %12 : vector<1x128xf32>
    %14 = math.exp %13 : vector<1x128xf32>
    %cst_12 = arith.constant 1.000000e+00 : f32
    %15 = vector.broadcast %cst_12 : f32 to vector<1x128xf32>
    %16 = arith.addf %15, %14 : vector<1x128xf32>
    %17 = arith.divf %15, %16 : vector<1x128xf32>
    %18 = vector.extract_strided_slice %11 {offsets = [0, 128], sizes = [1, 128], strides = [1, 1]} : vector<1x512xf32> to vector<1x128xf32>
    %19 = arith.negf %18 : vector<1x128xf32>
    %20 = math.exp %19 : vector<1x128xf32>
    %cst_13 = arith.constant 1.000000e+00 : f32
    %21 = vector.broadcast %cst_13 : f32 to vector<1x128xf32>
    %22 = arith.addf %21, %20 : vector<1x128xf32>
    %23 = arith.divf %21, %22 : vector<1x128xf32>
    %24 = vector.extract_strided_slice %11 {offsets = [0, 256], sizes = [1, 128], strides = [1, 1]} : vector<1x512xf32> to vector<1x128xf32>
    %25 = math.tanh %24 : vector<1x128xf32>
    %26 = vector.extract_strided_slice %11 {offsets = [0, 384], sizes = [1, 128], strides = [1, 1]} : vector<1x512xf32> to vector<1x128xf32>
    %27 = arith.negf %26 : vector<1x128xf32>
    %28 = math.exp %27 : vector<1x128xf32>
    %cst_14 = arith.constant 1.000000e+00 : f32
    %29 = vector.broadcast %cst_14 : f32 to vector<1x128xf32>
    %30 = arith.addf %29, %28 : vector<1x128xf32>
    %31 = arith.divf %29, %30 : vector<1x128xf32>
    %32 = arith.mulf %23, %8 : vector<1x128xf32>
    %33 = arith.mulf %17, %25 : vector<1x128xf32>
    %34 = arith.addf %32, %33 : vector<1x128xf32>
    %35 = math.tanh %34 : vector<1x128xf32>
    %36 = arith.mulf %31, %35 : vector<1x128xf32>
    %37 = vector.extract_strided_slice %5 {offsets = [1, 0], sizes = [1, 512], strides = [1, 1]} : vector<8x512xf32> to vector<1x512xf32>
    %cst_15 = arith.constant dense<0.000000e+00> : vector<1x512xf32>
    %38 = tpu.matmul %36, %6, %cst_15 {dimension_numbers = #tpu.dot_dimension_numbers<[1], [0], [0], [1], [0, 0, 1, 1], [], []>} : vector<1x128xf32>, vector<128x512xf32>, vector<1x512xf32> -> vector<1x512xf32>
    %39 = arith.addf %37, %38 : vector<1x512xf32>
    %40 = vector.extract_strided_slice %39 {offsets = [0, 0], sizes = [1, 128], strides = [1, 1]} : vector<1x512xf32> to vector<1x128xf32>
    %41 = arith.negf %40 : vector<1x128xf32>
    %42 = math.exp %41 : vector<1x128xf32>
    %cst_16 = arith.constant 1.000000e+00 : f32
    %43 = vector.broadcast %cst_16 : f32 to vector<1x128xf32>
    %44 = arith.addf %43, %42 : vector<1x128xf32>
    %45 = arith.divf %43, %44 : vector<1x128xf32>
    %46 = vector.extract_strided_slice %39 {offsets = [0, 128], sizes = [1, 128], strides = [1, 1]} : vector<1x512xf32> to vector<1x128xf32>
    %47 = arith.negf %46 : vector<1x128xf32>
    %48 = math.exp %47 : vector<1x128xf32>
    %cst_17 = arith.constant 1.000000e+00 : f32
    %49 = vector.broadcast %cst_17 : f32 to vector<1x128xf32>
    %50 = arith.addf %49, %48 : vector<1x128xf32>
    %51 = arith.divf %49, %50 : vector<1x128xf32>
    %52 = vector.extract_strided_slice %39 {offsets = [0, 256], sizes = [1, 128], strides = [1, 1]} : vector<1x512xf32> to vector<1x128xf32>
    %53 = math.tanh %52 : vector<1x128xf32>
    %54 = vector.extract_strided_slice %39 {offsets = [0, 384], sizes = [1, 128], strides = [1, 1]} : vector<1x512xf32> to vector<1x128xf32>
    %55 = arith.negf %54 : vector<1x128xf32>
    %56 = math.exp %55 : vector<1x128xf32>
    %cst_18 = arith.constant 1.000000e+00 : f32
    %57 = vector.broadcast %cst_18 : f32 to vector<1x128xf32>
    %58 = arith.addf %57, %56 : vector<1x128xf32>
    %59 = arith.divf %57, %58 : vector<1x128xf32>
    %60 = arith.mulf %51, %34 : vector<1x128xf32>
    %61 = arith.mulf %45, %53 : vector<1x128xf32>
    %62 = arith.addf %60, %61 : vector<1x128xf32>
    %63 = math.tanh %62 : vector<1x128xf32>
    %64 = arith.mulf %59, %63 : vector<1x128xf32>
    %65 = vector.extract_strided_slice %5 {offsets = [2, 0], sizes = [1, 512], strides = [1, 1]} : vector<8x512xf32> to vector<1x512xf32>
    %cst_19 = arith.constant dense<0.000000e+00> : vector<1x512xf32>
    %66 = tpu.matmul %64, %6, %cst_19 {dimension_numbers = #tpu.dot_dimension_numbers<[1], [0], [0], [1], [0, 0, 1, 1], [], []>} : vector<1x128xf32>, vector<128x512xf32>, vector<1x512xf32> -> vector<1x512xf32>
    %67 = arith.addf %65, %66 : vector<1x512xf32>
    %68 = vector.extract_strided_slice %67 {offsets = [0, 0], sizes = [1, 128], strides = [1, 1]} : vector<1x512xf32> to vector<1x128xf32>
    %69 = arith.negf %68 : vector<1x128xf32>
    %70 = math.exp %69 : vector<1x128xf32>
    %cst_20 = arith.constant 1.000000e+00 : f32
    %71 = vector.broadcast %cst_20 : f32 to vector<1x128xf32>
    %72 = arith.addf %71, %70 : vector<1x128xf32>
    %73 = arith.divf %71, %72 : vector<1x128xf32>
    %74 = vector.extract_strided_slice %67 {offsets = [0, 128], sizes = [1, 128], strides = [1, 1]} : vector<1x512xf32> to vector<1x128xf32>
    %75 = arith.negf %74 : vector<1x128xf32>
    %76 = math.exp %75 : vector<1x128xf32>
    %cst_21 = arith.constant 1.000000e+00 : f32
    %77 = vector.broadcast %cst_21 : f32 to vector<1x128xf32>
    %78 = arith.addf %77, %76 : vector<1x128xf32>
    %79 = arith.divf %77, %78 : vector<1x128xf32>
    %80 = vector.extract_strided_slice %67 {offsets = [0, 256], sizes = [1, 128], strides = [1, 1]} : vector<1x512xf32> to vector<1x128xf32>
    %81 = math.tanh %80 : vector<1x128xf32>
    %82 = vector.extract_strided_slice %67 {offsets = [0, 384], sizes = [1, 128], strides = [1, 1]} : vector<1x512xf32> to vector<1x128xf32>
    %83 = arith.negf %82 : vector<1x128xf32>
    %84 = math.exp %83 : vector<1x128xf32>
    %cst_22 = arith.constant 1.000000e+00 : f32
    %85 = vector.broadcast %cst_22 : f32 to vector<1x128xf32>
    %86 = arith.addf %85, %84 : vector<1x128xf32>
    %87 = arith.divf %85, %86 : vector<1x128xf32>
    %88 = arith.mulf %79, %62 : vector<1x128xf32>
    %89 = arith.mulf %73, %81 : vector<1x128xf32>
    %90 = arith.addf %88, %89 : vector<1x128xf32>
    %91 = math.tanh %90 : vector<1x128xf32>
    %92 = arith.mulf %87, %91 : vector<1x128xf32>
    %93 = vector.extract_strided_slice %5 {offsets = [3, 0], sizes = [1, 512], strides = [1, 1]} : vector<8x512xf32> to vector<1x512xf32>
    %cst_23 = arith.constant dense<0.000000e+00> : vector<1x512xf32>
    %94 = tpu.matmul %92, %6, %cst_23 {dimension_numbers = #tpu.dot_dimension_numbers<[1], [0], [0], [1], [0, 0, 1, 1], [], []>} : vector<1x128xf32>, vector<128x512xf32>, vector<1x512xf32> -> vector<1x512xf32>
    %95 = arith.addf %93, %94 : vector<1x512xf32>
    %96 = vector.extract_strided_slice %95 {offsets = [0, 0], sizes = [1, 128], strides = [1, 1]} : vector<1x512xf32> to vector<1x128xf32>
    %97 = arith.negf %96 : vector<1x128xf32>
    %98 = math.exp %97 : vector<1x128xf32>
    %cst_24 = arith.constant 1.000000e+00 : f32
    %99 = vector.broadcast %cst_24 : f32 to vector<1x128xf32>
    %100 = arith.addf %99, %98 : vector<1x128xf32>
    %101 = arith.divf %99, %100 : vector<1x128xf32>
    %102 = vector.extract_strided_slice %95 {offsets = [0, 128], sizes = [1, 128], strides = [1, 1]} : vector<1x512xf32> to vector<1x128xf32>
    %103 = arith.negf %102 : vector<1x128xf32>
    %104 = math.exp %103 : vector<1x128xf32>
    %cst_25 = arith.constant 1.000000e+00 : f32
    %105 = vector.broadcast %cst_25 : f32 to vector<1x128xf32>
    %106 = arith.addf %105, %104 : vector<1x128xf32>
    %107 = arith.divf %105, %106 : vector<1x128xf32>
    %108 = vector.extract_strided_slice %95 {offsets = [0, 256], sizes = [1, 128], strides = [1, 1]} : vector<1x512xf32> to vector<1x128xf32>
    %109 = math.tanh %108 : vector<1x128xf32>
    %110 = vector.extract_strided_slice %95 {offsets = [0, 384], sizes = [1, 128], strides = [1, 1]} : vector<1x512xf32> to vector<1x128xf32>
    %111 = arith.negf %110 : vector<1x128xf32>
    %112 = math.exp %111 : vector<1x128xf32>
    %cst_26 = arith.constant 1.000000e+00 : f32
    %113 = vector.broadcast %cst_26 : f32 to vector<1x128xf32>
    %114 = arith.addf %113, %112 : vector<1x128xf32>
    %115 = arith.divf %113, %114 : vector<1x128xf32>
    %116 = arith.mulf %107, %90 : vector<1x128xf32>
    %117 = arith.mulf %101, %109 : vector<1x128xf32>
    %118 = arith.addf %116, %117 : vector<1x128xf32>
    %119 = math.tanh %118 : vector<1x128xf32>
    %120 = arith.mulf %115, %119 : vector<1x128xf32>
    %121 = vector.extract_strided_slice %5 {offsets = [4, 0], sizes = [1, 512], strides = [1, 1]} : vector<8x512xf32> to vector<1x512xf32>
    %cst_27 = arith.constant dense<0.000000e+00> : vector<1x512xf32>
    %122 = tpu.matmul %120, %6, %cst_27 {dimension_numbers = #tpu.dot_dimension_numbers<[1], [0], [0], [1], [0, 0, 1, 1], [], []>} : vector<1x128xf32>, vector<128x512xf32>, vector<1x512xf32> -> vector<1x512xf32>
    %123 = arith.addf %121, %122 : vector<1x512xf32>
    %124 = vector.extract_strided_slice %123 {offsets = [0, 0], sizes = [1, 128], strides = [1, 1]} : vector<1x512xf32> to vector<1x128xf32>
    %125 = arith.negf %124 : vector<1x128xf32>
    %126 = math.exp %125 : vector<1x128xf32>
    %cst_28 = arith.constant 1.000000e+00 : f32
    %127 = vector.broadcast %cst_28 : f32 to vector<1x128xf32>
    %128 = arith.addf %127, %126 : vector<1x128xf32>
    %129 = arith.divf %127, %128 : vector<1x128xf32>
    %130 = vector.extract_strided_slice %123 {offsets = [0, 128], sizes = [1, 128], strides = [1, 1]} : vector<1x512xf32> to vector<1x128xf32>
    %131 = arith.negf %130 : vector<1x128xf32>
    %132 = math.exp %131 : vector<1x128xf32>
    %cst_29 = arith.constant 1.000000e+00 : f32
    %133 = vector.broadcast %cst_29 : f32 to vector<1x128xf32>
    %134 = arith.addf %133, %132 : vector<1x128xf32>
    %135 = arith.divf %133, %134 : vector<1x128xf32>
    %136 = vector.extract_strided_slice %123 {offsets = [0, 256], sizes = [1, 128], strides = [1, 1]} : vector<1x512xf32> to vector<1x128xf32>
    %137 = math.tanh %136 : vector<1x128xf32>
    %138 = vector.extract_strided_slice %123 {offsets = [0, 384], sizes = [1, 128], strides = [1, 1]} : vector<1x512xf32> to vector<1x128xf32>
    %139 = arith.negf %138 : vector<1x128xf32>
    %140 = math.exp %139 : vector<1x128xf32>
    %cst_30 = arith.constant 1.000000e+00 : f32
    %141 = vector.broadcast %cst_30 : f32 to vector<1x128xf32>
    %142 = arith.addf %141, %140 : vector<1x128xf32>
    %143 = arith.divf %141, %142 : vector<1x128xf32>
    %144 = arith.mulf %135, %118 : vector<1x128xf32>
    %145 = arith.mulf %129, %137 : vector<1x128xf32>
    %146 = arith.addf %144, %145 : vector<1x128xf32>
    %147 = math.tanh %146 : vector<1x128xf32>
    %148 = arith.mulf %143, %147 : vector<1x128xf32>
    %149 = vector.extract_strided_slice %5 {offsets = [5, 0], sizes = [1, 512], strides = [1, 1]} : vector<8x512xf32> to vector<1x512xf32>
    %cst_31 = arith.constant dense<0.000000e+00> : vector<1x512xf32>
    %150 = tpu.matmul %148, %6, %cst_31 {dimension_numbers = #tpu.dot_dimension_numbers<[1], [0], [0], [1], [0, 0, 1, 1], [], []>} : vector<1x128xf32>, vector<128x512xf32>, vector<1x512xf32> -> vector<1x512xf32>
    %151 = arith.addf %149, %150 : vector<1x512xf32>
    %152 = vector.extract_strided_slice %151 {offsets = [0, 0], sizes = [1, 128], strides = [1, 1]} : vector<1x512xf32> to vector<1x128xf32>
    %153 = arith.negf %152 : vector<1x128xf32>
    %154 = math.exp %153 : vector<1x128xf32>
    %cst_32 = arith.constant 1.000000e+00 : f32
    %155 = vector.broadcast %cst_32 : f32 to vector<1x128xf32>
    %156 = arith.addf %155, %154 : vector<1x128xf32>
    %157 = arith.divf %155, %156 : vector<1x128xf32>
    %158 = vector.extract_strided_slice %151 {offsets = [0, 128], sizes = [1, 128], strides = [1, 1]} : vector<1x512xf32> to vector<1x128xf32>
    %159 = arith.negf %158 : vector<1x128xf32>
    %160 = math.exp %159 : vector<1x128xf32>
    %cst_33 = arith.constant 1.000000e+00 : f32
    %161 = vector.broadcast %cst_33 : f32 to vector<1x128xf32>
    %162 = arith.addf %161, %160 : vector<1x128xf32>
    %163 = arith.divf %161, %162 : vector<1x128xf32>
    %164 = vector.extract_strided_slice %151 {offsets = [0, 256], sizes = [1, 128], strides = [1, 1]} : vector<1x512xf32> to vector<1x128xf32>
    %165 = math.tanh %164 : vector<1x128xf32>
    %166 = vector.extract_strided_slice %151 {offsets = [0, 384], sizes = [1, 128], strides = [1, 1]} : vector<1x512xf32> to vector<1x128xf32>
    %167 = arith.negf %166 : vector<1x128xf32>
    %168 = math.exp %167 : vector<1x128xf32>
    %cst_34 = arith.constant 1.000000e+00 : f32
    %169 = vector.broadcast %cst_34 : f32 to vector<1x128xf32>
    %170 = arith.addf %169, %168 : vector<1x128xf32>
    %171 = arith.divf %169, %170 : vector<1x128xf32>
    %172 = arith.mulf %163, %146 : vector<1x128xf32>
    %173 = arith.mulf %157, %165 : vector<1x128xf32>
    %174 = arith.addf %172, %173 : vector<1x128xf32>
    %175 = math.tanh %174 : vector<1x128xf32>
    %176 = arith.mulf %171, %175 : vector<1x128xf32>
    %177 = vector.extract_strided_slice %5 {offsets = [6, 0], sizes = [1, 512], strides = [1, 1]} : vector<8x512xf32> to vector<1x512xf32>
    %cst_35 = arith.constant dense<0.000000e+00> : vector<1x512xf32>
    %178 = tpu.matmul %176, %6, %cst_35 {dimension_numbers = #tpu.dot_dimension_numbers<[1], [0], [0], [1], [0, 0, 1, 1], [], []>} : vector<1x128xf32>, vector<128x512xf32>, vector<1x512xf32> -> vector<1x512xf32>
    %179 = arith.addf %177, %178 : vector<1x512xf32>
    %180 = vector.extract_strided_slice %179 {offsets = [0, 0], sizes = [1, 128], strides = [1, 1]} : vector<1x512xf32> to vector<1x128xf32>
    %181 = arith.negf %180 : vector<1x128xf32>
    %182 = math.exp %181 : vector<1x128xf32>
    %cst_36 = arith.constant 1.000000e+00 : f32
    %183 = vector.broadcast %cst_36 : f32 to vector<1x128xf32>
    %184 = arith.addf %183, %182 : vector<1x128xf32>
    %185 = arith.divf %183, %184 : vector<1x128xf32>
    %186 = vector.extract_strided_slice %179 {offsets = [0, 128], sizes = [1, 128], strides = [1, 1]} : vector<1x512xf32> to vector<1x128xf32>
    %187 = arith.negf %186 : vector<1x128xf32>
    %188 = math.exp %187 : vector<1x128xf32>
    %cst_37 = arith.constant 1.000000e+00 : f32
    %189 = vector.broadcast %cst_37 : f32 to vector<1x128xf32>
    %190 = arith.addf %189, %188 : vector<1x128xf32>
    %191 = arith.divf %189, %190 : vector<1x128xf32>
    %192 = vector.extract_strided_slice %179 {offsets = [0, 256], sizes = [1, 128], strides = [1, 1]} : vector<1x512xf32> to vector<1x128xf32>
    %193 = math.tanh %192 : vector<1x128xf32>
    %194 = vector.extract_strided_slice %179 {offsets = [0, 384], sizes = [1, 128], strides = [1, 1]} : vector<1x512xf32> to vector<1x128xf32>
    %195 = arith.negf %194 : vector<1x128xf32>
    %196 = math.exp %195 : vector<1x128xf32>
    %cst_38 = arith.constant 1.000000e+00 : f32
    %197 = vector.broadcast %cst_38 : f32 to vector<1x128xf32>
    %198 = arith.addf %197, %196 : vector<1x128xf32>
    %199 = arith.divf %197, %198 : vector<1x128xf32>
    %200 = arith.mulf %191, %174 : vector<1x128xf32>
    %201 = arith.mulf %185, %193 : vector<1x128xf32>
    %202 = arith.addf %200, %201 : vector<1x128xf32>
    %203 = math.tanh %202 : vector<1x128xf32>
    %204 = arith.mulf %199, %203 : vector<1x128xf32>
    %205 = vector.extract_strided_slice %5 {offsets = [7, 0], sizes = [1, 512], strides = [1, 1]} : vector<8x512xf32> to vector<1x512xf32>
    %cst_39 = arith.constant dense<0.000000e+00> : vector<1x512xf32>
    %206 = tpu.matmul %204, %6, %cst_39 {dimension_numbers = #tpu.dot_dimension_numbers<[1], [0], [0], [1], [0, 0, 1, 1], [], []>} : vector<1x128xf32>, vector<128x512xf32>, vector<1x512xf32> -> vector<1x512xf32>
    %207 = arith.addf %205, %206 : vector<1x512xf32>
    %208 = vector.extract_strided_slice %207 {offsets = [0, 0], sizes = [1, 128], strides = [1, 1]} : vector<1x512xf32> to vector<1x128xf32>
    %209 = arith.negf %208 : vector<1x128xf32>
    %210 = math.exp %209 : vector<1x128xf32>
    %cst_40 = arith.constant 1.000000e+00 : f32
    %211 = vector.broadcast %cst_40 : f32 to vector<1x128xf32>
    %212 = arith.addf %211, %210 : vector<1x128xf32>
    %213 = arith.divf %211, %212 : vector<1x128xf32>
    %214 = vector.extract_strided_slice %207 {offsets = [0, 128], sizes = [1, 128], strides = [1, 1]} : vector<1x512xf32> to vector<1x128xf32>
    %215 = arith.negf %214 : vector<1x128xf32>
    %216 = math.exp %215 : vector<1x128xf32>
    %cst_41 = arith.constant 1.000000e+00 : f32
    %217 = vector.broadcast %cst_41 : f32 to vector<1x128xf32>
    %218 = arith.addf %217, %216 : vector<1x128xf32>
    %219 = arith.divf %217, %218 : vector<1x128xf32>
    %220 = vector.extract_strided_slice %207 {offsets = [0, 256], sizes = [1, 128], strides = [1, 1]} : vector<1x512xf32> to vector<1x128xf32>
    %221 = math.tanh %220 : vector<1x128xf32>
    %222 = vector.extract_strided_slice %207 {offsets = [0, 384], sizes = [1, 128], strides = [1, 1]} : vector<1x512xf32> to vector<1x128xf32>
    %223 = arith.negf %222 : vector<1x128xf32>
    %224 = math.exp %223 : vector<1x128xf32>
    %cst_42 = arith.constant 1.000000e+00 : f32
    %225 = vector.broadcast %cst_42 : f32 to vector<1x128xf32>
    %226 = arith.addf %225, %224 : vector<1x128xf32>
    %227 = arith.divf %225, %226 : vector<1x128xf32>
    %228 = arith.mulf %219, %202 : vector<1x128xf32>
    %229 = arith.mulf %213, %221 : vector<1x128xf32>
    %230 = arith.addf %228, %229 : vector<1x128xf32>
    %231 = math.tanh %230 : vector<1x128xf32>
    %232 = arith.mulf %227, %231 : vector<1x128xf32>
    %c0_43 = arith.constant 0 : index
    %c0_44 = arith.constant 0 : index
    %233 = vector.load %arg6[%c0_43, %c0_44] : memref<128x3xf32, #tpu.memory_space<vmem>>, vector<128x3xf32>
    %cst_45 = arith.constant dense<0.000000e+00> : vector<1x3xf32>
    %234 = tpu.matmul %232, %233, %cst_45 {dimension_numbers = #tpu.dot_dimension_numbers<[1], [0], [0], [1], [0, 0, 1, 1], [], []>} : vector<1x128xf32>, vector<128x3xf32>, vector<1x3xf32> -> vector<1x3xf32>
    %c0_46 = arith.constant 0 : index
    %c0_47 = arith.constant 0 : index
    %235 = vector.load %arg7[%c0_46, %c0_47] : memref<1x3xf32, #tpu.memory_space<vmem>>, vector<1x3xf32>
    %236 = arith.addf %234, %235 : vector<1x3xf32>
    %c0_48 = arith.constant 0 : index
    %c0_49 = arith.constant 0 : index
    %237 = vector.load %arg8[%c0_48, %c0_49] : memref<1x3xf32, #tpu.memory_space<vmem>>, vector<1x3xf32>
    tpu.vector_store %arg8[%c0_48, %c0_49], %236 {strides = array<i32>} : memref<1x3xf32, #tpu.memory_space<vmem>>, vector<1x3xf32>,
    return
  }
}

</mosaic_0001>

<llo_original>
// kernel: tpu_custom_call.1
$region0: #{tpu_custom_call.1}
  #allocation0 [shape = 'u32[]', space=smem, size = 0x4, offset = 0x4, fixed_abs, tag = 'smem constant byte address 0x4 - core index']
  #allocation1 [shape = 'u32[144,128]{1,0:T(1,128)}', space=vmem, size = 0x12000, scoped, tag = 'internal scratch']
  %s0 = inlined_call_operand.vmem [shape: f32[8,20], index: 0, kind: input, shape index: {}]
  %s1 = inlined_call_operand.vmem [shape: f32[20,512], index: 1, kind: input, shape index: {}]
  %s2 = inlined_call_operand.hbm [shape: f32[128,512], index: 2, kind: input, shape index: {}]
  %s3 = inlined_call_operand.vmem [shape: f32[1,512], index: 3, kind: input, shape index: {}]
  %s4 = inlined_call_operand.vmem [shape: f32[1,128], index: 4, kind: input, shape index: {}]
  %s5 = inlined_call_operand.vmem [shape: f32[1,128], index: 5, kind: input, shape index: {}]
  %s6 = inlined_call_operand.vmem [shape: f32[128,3], index: 6, kind: input, shape index: {}]
  %s7 = inlined_call_operand.vmem [shape: f32[1,3], index: 7, kind: input, shape index: {}]
  %s8 = inlined_call_operand.hbm [shape: f32[1,3], index: 8, kind: output, shape index: {}]
  %s9 = sld [smem:[#allocation0]]
  $region46: #{tpu_custom_call.1} parent=0
    _
  %s11 = ssub.s32 1, %s9
  %s12 = scalar_select 0, %s11, %s9
  $region1: #{tpu_custom_call.1} parent=0
    #allocation2 [shape = 'u8[262144]{0}', space=vmem, size = 0x40000, scoped, tag = 'input window, operand 2, single buffered']
    #allocation3 [shape = 's32[1]{0}', space=sflag, size = 0x4, scoped, tag = 'scoped memory for tpu_custom_call.1']
    #allocation4 [shape = 's32[1]{0}', space=sflag, size = 0x4, scoped, tag = 'scoped memory for tpu_custom_call.1']
    #allocation5 [shape = 'u8[512]{0}', space=vmem, size = 0x400, scoped, tag = 'output window, operand 0, single buffered']
    %13 = vsyncpa [#allocation3], 0
    %14 = vsyncpa [#allocation4], 0
    // Predicated region
    $region2: #{tpu_custom_call.1} parent=1 // pred_check
      _
    $region3: #{tpu_custom_call.1} parent=1 // pred_check_branch
      %16 = sbr.rel (0) target = $region5
    $region4: #{tpu_custom_call.1} parent=1 // pred_region
      _
    $region5: #{tpu_custom_call.1} parent=1 // pred_fallthru
      _
    // Predicated region
    $region6: #{tpu_custom_call.1} parent=1 // pred_check
      _
    $region7: #{tpu_custom_call.1} parent=1 // pred_check_branch
      %18 = sbr.rel (0) target = $region9
    $region8: #{tpu_custom_call.1} parent=1 // pred_region
      _
    $region9: #{tpu_custom_call.1} parent=1 // pred_fallthru
      _
    // Predicated region
    $region10: #{tpu_custom_call.1} parent=1 // pred_check
      _
    $region11: #{tpu_custom_call.1} parent=1 // pred_check_branch
      %20 = sbr.rel (0) target = $region13
    $region12: #{tpu_custom_call.1} parent=1 // pred_region
      %s22 = ssub.s32 8192, 8192
      %23 = vsyncadd [#allocation3], %s22
      %s24 = sshll.u32 [#allocation2], 4
      %s25 = int_to_ptr.vmem [resolvable:$true] %s24
      %30 = dma.hbm_to_vmem [thread:$0]  %s2, 8192, %s25, [#allocation3], 512, 512, 32
    $region13: #{tpu_custom_call.1} parent=1 // pred_fallthru
      _
    // Predicated region
    $region14: #{tpu_custom_call.1} parent=1 // pred_check
      _
    $region15: #{tpu_custom_call.1} parent=1 // pred_check_branch
      %32 = sbr.rel (0) target = $region17
    $region16: #{tpu_custom_call.1} parent=1 // pred_region
      _
    $region17: #{tpu_custom_call.1} parent=1 // pred_fallthru
      _
    // Predicated region
    $region18: #{tpu_custom_call.1} parent=1 // pred_check
      _
    $region19: #{tpu_custom_call.1} parent=1 // pred_check_branch
      %34 = sbr.rel (0) target = $region21
    $region20: #{tpu_custom_call.1} parent=1 // pred_region
      _
    $region21: #{tpu_custom_call.1} parent=1 // pred_fallthru
      _
    // Predicated region
    $region22: #{tpu_custom_call.1} parent=1 // pred_check
      _
    $region23: #{tpu_custom_call.1} parent=1 // pred_check_branch
      %36 = sbr.rel (0) target = $region25
    $region24: #{tpu_custom_call.1} parent=1 // pred_region
      _
    $region25: #{tpu_custom_call.1} parent=1 // pred_fallthru
      _
    // Predicated region
    $region26: #{tpu_custom_call.1} parent=1 // pred_check
      _
    $region27: #{tpu_custom_call.1} parent=1 // pred_check_branch
      %38 = sbr.rel (0) target = $region29
    $region28: #{tpu_custom_call.1} parent=1 // pred_region
      _
    $region29: #{tpu_custom_call.1} parent=1 // pred_fallthru
      _
    // Predicated region
    $region30: #{tpu_custom_call.1} parent=1 // pred_check
      _
    $region31: #{tpu_custom_call.1} parent=1 // pred_check_branch
      %40 = sbr.rel (0) target = $region33
    $region32: #{tpu_custom_call.1} parent=1 // pred_region
      _
    $region33: #{tpu_custom_call.1} parent=1 // pred_fallthru
      _
    // Predicated region
    $region34: #{tpu_custom_call.1} parent=1 // pred_check
      _
    $region35: #{tpu_custom_call.1} parent=1 // pred_check_branch
      %42 = sbr.rel (0) target = $region37
    $region36: #{tpu_custom_call.1} parent=1 // pred_region
      %43 = dma.done [#allocation3], 8192
    $region37: #{tpu_custom_call.1} parent=1 // pred_fallthru
      _
    %v44 = vld [vmem:[%s0] sm:$0xff]
    %v45 = vld [vmem:[%s1] sm:$0xff]
    %v46 = vld [vmem:[%s1 + $0x8] sm:$0xff]
    %v47 = vld [vmem:[%s1 + $0x10] sm:$0xff]
    %v48 = vld [vmem:[%s1 + $0x18] sm:$0xff]
    %v49 = vld [vmem:[%s1 + $0x20] sm:$0xff]
    %v50 = vld [vmem:[%s1 + $0x28] sm:$0xff]
    %v51 = vld [vmem:[%s1 + $0x30] sm:$0xff]
    %v52 = vld [vmem:[%s1 + $0x38] sm:$0xff]
    %v53 = vld [vmem:[%s1 + $0x40] sm:$0xf]
    %v54 = vld [vmem:[%s1 + $0x48] sm:$0xf]
    %v55 = vld [vmem:[%s1 + $0x50] sm:$0xf]
    %v56 = vld [vmem:[%s1 + $0x58] sm:$0xf]
    %v57 = vld [vmem:[%s3] sm:$0xf]
    %v59 = vlaneseq
    %v60 = vshrl.u32 %v59, 7
    %v61 = vsub.s32 0, %v60
    %v62 = vrot.slane %v57, %v61
    %v63 = vlaneseq
    %v64 = vshrl.u32 %v63, 7
    %v65 = vsub.s32 1, %v64
    %v66 = vrot.slane %v57, %v65
    %v67 = vlaneseq
    %v68 = vshrl.u32 %v67, 7
    %v69 = vsub.s32 2, %v68
    %v70 = vrot.slane %v57, %v69
    %v71 = vlaneseq
    %v72 = vshrl.u32 %v71, 7
    %v73 = vsub.s32 3, %v72
    %v74 = vrot.slane %v57, %v73
    %vm79 = vcmask 162816
    %v81 = vsel %vm79, %v44, 0
    %vm83 = vcmask 1043456
    %v85 = vsel %vm83, %v53, 0
    %v88 = vsel %vm83, %v54, 0
    %v91 = vsel %vm83, %v55, 0
    %v94 = vsel %vm83, %v56, 0
    %96 = vmatprep.subr.mxu0 %v46
    %97 = vmatpush1.msra.mxu0 %v45
    %98 = vmatprep.subr.mxu0 %v50
    %99 = vmatpush1.msra.mxu0 %v49
    %100 = vmatprep.subr.mxu0 %v88
    %101 = vmatpush1.msra.mxu0 %v85
    %102 = vmatprep.subr.mxu0 0.0
    %103 = vmatpush1.msra.mxu0 0.0
    %104 = vmatprep.subr.mxu0 0.0
    %105 = vmatpush1.msra.mxu0 0.0
    %106 = vmatprep.subr.mxu0 0.0
    %107 = vmatpush1.msra.mxu0 0.0
    %108 = vmatprep.subr.mxu0 0.0
    %109 = vmatpush1.msra.mxu0 0.0
    %110 = vmatprep.subr.mxu0 0.0
    %111 = vmatpush1.msra.mxu0 0.0
    %112 = vmatprep.subr.mxu0 0.0
    %113 = vmatpush1.msra.mxu0 0.0
    %114 = vmatprep.subr.mxu0 0.0
    %115 = vmatpush1.msra.mxu0 0.0
    %116 = vmatprep.subr.mxu0 0.0
    %117 = vmatpush1.msra.mxu0 0.0
    %118 = vmatprep.subr.mxu0 0.0
    %119 = vmatpush1.msra.mxu0 0.0
    %120 = vmatprep.subr.mxu0 0.0
    %121 = vmatpush1.msra.mxu0 0.0
    %122 = vmatprep.subr.mxu0 0.0
    %123 = vmatpush1.msra.mxu0 0.0
    %124 = vmatprep.subr.mxu0 0.0
    %125 = vmatpush1.msra.mxu0 0.0
    %126 = vmatprep.subr.mxu0 0.0
    %127 = vmatpush1.msra.mxu0 0.0
    %128 = vmatprep.subr.mxu0 0.0
    %129 = vmatpush1.msra.mxu0 0.0
    %130 = vmatprep.subr.mxu0 0.0
    %131 = vmatpush1.msra.mxu0 0.0
    %132 = vmatprep.subr.mxu0 0.0
    %133 = vmatpush1.msra.mxu0 0.0
    %134 = vmatprep.subr.mxu0 0.0
    %135 = vmatpush1.msra.mxu0 0.0
    %136 = vmatprep.subr.mxu0 0.0
    %137 = vmatpush1.msra.mxu0 0.0
    %138 = vmatprep.subr.mxu0 0.0
    %139 = vmatpush1.msra.mxu0 0.0
    %140 = vmatprep.subr.mxu0 0.0
    %141 = vmatpush1.msra.mxu0 0.0
    %142 = vmatprep.subr.mxu0 0.0
    %143 = vmatpush1.msra.mxu0 0.0
    %144 = vmatprep.subr.mxu0 0.0
    %145 = vmatpush1.msra.mxu0 0.0
    %146 = vmatprep.subr.mxu0 0.0
    %147 = vmatpush1.msra.mxu0 0.0
    %148 = vmatprep.subr.mxu0 0.0
    %149 = vmatpush1.msra.mxu0 0.0
    %150 = vmatprep.subr.mxu0 0.0
    %151 = vmatpush1.msra.mxu0 0.0
    %152 = vmatprep.subr.mxu0 0.0
    %153 = vmatpush1.msra.mxu0 0.0
    %154 = vmatprep.subr.mxu0 0.0
    %155 = vmatpush1.msra.mxu0 0.0
    %156 = vmatprep.subr.mxu0 0.0
    %157 = vmatpush1.msra.mxu0 0.0
    %158 = vmatprep.subr.mxu0 0.0
    %159 = vmatpush1.msra.mxu0 0.0
    %160 = vmatprep.mubr.f32.mxu0 0.0
    %161 = vmatmul.mubr.f32.gmra.mrb[0].mxu0 %v81
    %v162 = vpop.f32.mrb[0].mxu0
    %v163 = vadd.f32 %v62, %v162
    %v164 = vpop.f32.mrb[0].mxu0
    %v165 = vadd.f32 %v66, %v164
    %166 = vdwg.mxu0
    %167 = vmatprep.subr.mxu0 %v48
    %168 = vmatpush1.msra.mxu0 %v47
    %169 = vmatprep.subr.mxu0 %v52
    %170 = vmatpush1.msra.mxu0 %v51
    %171 = vmatprep.subr.mxu0 %v94
    %172 = vmatpush1.msra.mxu0 %v91
    %173 = vmatprep.subr.mxu0 0.0
    %174 = vmatpush1.msra.mxu0 0.0
    %175 = vmatprep.subr.mxu0 0.0
    %176 = vmatpush1.msra.mxu0 0.0
    %177 = vmatprep.subr.mxu0 0.0
    %178 = vmatpush1.msra.mxu0 0.0
    %179 = vmatprep.subr.mxu0 0.0
    %180 = vmatpush1.msra.mxu0 0.0
    %181 = vmatprep.subr.mxu0 0.0
    %182 = vmatpush1.msra.mxu0 0.0
    %183 = vmatprep.subr.mxu0 0.0
    %184 = vmatpush1.msra.mxu0 0.0
    %185 = vmatprep.subr.mxu0 0.0
    %186 = vmatpush1.msra.mxu0 0.0
    %187 = vmatprep.subr.mxu0 0.0
    %188 = vmatpush1.msra.mxu0 0.0
    %189 = vmatprep.subr.mxu0 0.0
    %190 = vmatpush1.msra.mxu0 0.0
    %191 = vmatprep.subr.mxu0 0.0
    %192 = vmatpush1.msra.mxu0 0.0
    %193 = vmatprep.subr.mxu0 0.0
    %194 = vmatpush1.msra.mxu0 0.0
    %195 = vmatprep.subr.mxu0 0.0
    %196 = vmatpush1.msra.mxu0 0.0
    %197 = vmatprep.subr.mxu0 0.0
    %198 = vmatpush1.msra.mxu0 0.0
    %199 = vmatprep.subr.mxu0 0.0
    %200 = vmatpush1.msra.mxu0 0.0
    %201 = vmatprep.subr.mxu0 0.0
    %202 = vmatpush1.msra.mxu0 0.0
    %203 = vmatprep.subr.mxu0 0.0
    %204 = vmatpush1.msra.mxu0 0.0
    %205 = vmatprep.subr.mxu0 0.0
    %206 = vmatpush1.msra.mxu0 0.0
    %207 = vmatprep.subr.mxu0 0.0
    %208 = vmatpush1.msra.mxu0 0.0
    %209 = vmatprep.subr.mxu0 0.0
    %210 = vmatpush1.msra.mxu0 0.0
    %211 = vmatprep.subr.mxu0 0.0
    %212 = vmatpush1.msra.mxu0 0.0
    %213 = vmatprep.subr.mxu0 0.0
    %214 = vmatpush1.msra.mxu0 0.0
    %215 = vmatprep.subr.mxu0 0.0
    %216 = vmatpush1.msra.mxu0 0.0
    %217 = vmatprep.subr.mxu0 0.0
    %218 = vmatpush1.msra.mxu0 0.0
    %219 = vmatprep.subr.mxu0 0.0
    %220 = vmatpush1.msra.mxu0 0.0
    %221 = vmatprep.subr.mxu0 0.0
    %222 = vmatpush1.msra.mxu0 0.0
    %223 = vmatprep.subr.mxu0 0.0
    %224 = vmatpush1.msra.mxu0 0.0
    %225 = vmatprep.subr.mxu0 0.0
    %226 = vmatpush1.msra.mxu0 0.0
    %227 = vmatprep.subr.mxu0 0.0
    %228 = vmatpush1.msra.mxu0 0.0
    %229 = vmatprep.subr.mxu0 0.0
    %230 = vmatpush1.msra.mxu0 0.0
    %231 = vmatprep.mubr.f32.mxu0 0.0
    %232 = vmatmul.mubr.f32.gmra.mrb[0].mxu0 %v81
    %v233 = vpop.f32.mrb[0].mxu0
    %v234 = vadd.f32 %v70, %v233
    %v235 = vpop.f32.mrb[0].mxu0
    %v236 = vadd.f32 %v74, %v235
    %237 = vdwg.mxu0
    %v238 = vld [vmem:[#allocation2] sm:$0xff]
    %v239 = vld [vmem:[#allocation2 + $0x8] sm:$0xff]
    %v240 = vld [vmem:[#allocation2 + $0x10] sm:$0xff]
    %v241 = vld [vmem:[#allocation2 + $0x18] sm:$0xff]
    %v242 = vld [vmem:[#allocation2 + $0x20] sm:$0xff]
    %v243 = vld [vmem:[#allocation2 + $0x28] sm:$0xff]
    %v244 = vld [vmem:[#allocation2 + $0x30] sm:$0xff]
    %v245 = vld [vmem:[#allocation2 + $0x38] sm:$0xff]
    %v246 = vld [vmem:[#allocation2 + $0x40] sm:$0xff]
    %v247 = vld [vmem:[#allocation2 + $0x48] sm:$0xff]
    %v248 = vld [vmem:[#allocation2 + $0x50] sm:$0xff]
    %v249 = vld [vmem:[#allocation2 + $0x58] sm:$0xff]
    %v250 = vld [vmem:[#allocation2 + $0x60] sm:$0xff]
    %v251 = vld [vmem:[#allocation2 + $0x68] sm:$0xff]
    %v252 = vld [vmem:[#allocation2 + $0x70] sm:$0xff]
    %v253 = vld [vmem:[#allocation2 + $0x78] sm:$0xff]
    %v254 = vld [vmem:[#allocation2 + $0x80] sm:$0xff]
    %v255 = vld [vmem:[#allocation2 + $0x88] sm:$0xff]
    %v256 = vld [vmem:[#allocation2 + $0x90] sm:$0xff]
    %v257 = vld [vmem:[#allocation2 + $0x98] sm:$0xff]
    %v258 = vld [vmem:[#allocation2 + $0xa0] sm:$0xff]
    %v259 = vld [vmem:[#allocation2 + $0xa8] sm:$0xff]
    %v260 = vld [vmem:[#allocation2 + $0xb0] sm:$0xff]
    %v261 = vld [vmem:[#allocation2 + $0xb8] sm:$0xff]
    %v262 = vld [vmem:[#allocation2 + $0xc0] sm:$0xff]
    %v263 = vld [vmem:[#allocation2 + $0xc8] sm:$0xff]
    %v264 = vld [vmem:[#allocation2 + $0xd0] sm:$0xff]
    %v265 = vld [vmem:[#allocation2 + $0xd8] sm:$0xff]
    %v266 = vld [vmem:[#allocation2 + $0xe0] sm:$0xff]
    %v267 = vld [vmem:[#allocation2 + $0xe8] sm:$0xff]
    %v268 = vld [vmem:[#allocation2 + $0xf0] sm:$0xff]
    %v269 = vld [vmem:[#allocation2 + $0xf8] sm:$0xff]
    %v270 = vld [vmem:[#allocation2 + $0x100] sm:$0xff]
    %v271 = vld [vmem:[#allocation2 + $0x108] sm:$0xff]
    %v272 = vld [vmem:[#allocation2 + $0x110] sm:$0xff]
    %v273 = vld [vmem:[#allocation2 + $0x118] sm:$0xff]
    %v274 = vld [vmem:[#allocation2 + $0x120] sm:$0xff]
    %v275 = vld [vmem:[#allocation2 + $0x128] sm:$0xff]
    %v276 = vld [vmem:[#allocation2 + $0x130] sm:$0xff]
    %v277 = vld [vmem:[#allocation2 + $0x138] sm:$0xff]
    %v278 = vld [vmem:[#allocation2 + $0x140] sm:$0xff]
    %v279 = vld [vmem:[#allocation2 + $0x148] sm:$0xff]
    %v280 = vld [vmem:[#allocation2 + $0x150] sm:$0xff]
    %v281 = vld [vmem:[#allocation2 + $0x158] sm:$0xff]
    %v282 = vld [vmem:[#allocation2 + $0x160] sm:$0xff]
    %v283 = vld [vmem:[#allocation2 + $0x168] sm:$0xff]
    %v284 = vld [vmem:[#allocation2 + $0x170] sm:$0xff]
    %v285 = vld [vmem:[#allocation2 + $0x178] sm:$0xff]
    %v286 = vld [vmem:[#allocation2 + $0x180] sm:$0xff]
    %v287 = vld [vmem:[#allocation2 + $0x188] sm:$0xff]
    %v288 = vld [vmem:[#allocation2 + $0x190] sm:$0xff]
    %v289 = vld [vmem:[#allocation2 + $0x198] sm:$0xff]
    %v290 = vld [vmem:[#allocation2 + $0x1a0] sm:$0xff]
    %v291 = vld [vmem:[#allocation2 + $0x1a8] sm:$0xff]
    %v292 = vld [vmem:[#allocation2 + $0x1b0] sm:$0xff]
    %v293 = vld [vmem:[#allocation2 + $0x1b8] sm:$0xff]
    %v294 = vld [vmem:[#allocation2 + $0x1c0] sm:$0xff]
    %v295 = vld [vmem:[#allocation2 + $0x1c8] sm:$0xff]
    %v296 = vld [vmem:[#allocation2 + $0x1d0] sm:$0xff]
    %v297 = vld [vmem:[#allocation2 + $0x1d8] sm:$0xff]
    %v298 = vld [vmem:[#allocation2 + $0x1e0] sm:$0xff]
    %v299 = vld [vmem:[#allocation2 + $0x1e8] sm:$0xff]
    %v300 = vld [vmem:[#allocation2 + $0x1f0] sm:$0xff]
    %v301 = vld [vmem:[#allocation2 + $0x1f8] sm:$0xff]
    %v302 = vld [vmem:[%s4] sm:$0x1]
    %v303 = vld [vmem:[%s5] sm:$0x1]
    %304 = vmatprep.subr.mxu0 %v239
    %305 = vmatpush1.msra.mxu0 %v238
    %306 = vmatprep.subr.mxu0 %v243
    %307 = vmatpush1.msra.mxu0 %v242
    %308 = vmatprep.subr.mxu0 %v247
    %309 = vmatpush1.msra.mxu0 %v246
    %310 = vmatprep.subr.mxu0 %v251
    %311 = vmatpush1.msra.mxu0 %v250
    %312 = vmatprep.subr.mxu0 %v255
    %313 = vmatpush1.msra.mxu0 %v254
    %314 = vmatprep.subr.mxu0 %v259
    %315 = vmatpush1.msra.mxu0 %v258
    %316 = vmatprep.subr.mxu0 %v263
    %317 = vmatpush1.msra.mxu0 %v262
    %318 = vmatprep.subr.mxu0 %v267
    %319 = vmatpush1.msra.mxu0 %v266
    %320 = vmatprep.subr.mxu0 %v271
    %321 = vmatpush1.msra.mxu0 %v270
    %322 = vmatprep.subr.mxu0 %v275
    %323 = vmatpush1.msra.mxu0 %v274
    %324 = vmatprep.subr.mxu0 %v279
    %325 = vmatpush1.msra.mxu0 %v278
    %326 = vmatprep.subr.mxu0 %v283
    %327 = vmatpush1.msra.mxu0 %v282
    %328 = vmatprep.subr.mxu0 %v287
    %329 = vmatpush1.msra.mxu0 %v286
    %330 = vmatprep.subr.mxu0 %v291
    %331 = vmatpush1.msra.mxu0 %v290
    %332 = vmatprep.subr.mxu0 %v295
    %333 = vmatpush1.msra.mxu0 %v294
    %334 = vmatprep.subr.mxu0 %v299
    %335 = vmatpush1.msra.mxu0 %v298
    %336 = vmatprep.subr.mxu0 0.0
    %337 = vmatpush1.msra.mxu0 0.0
    %338 = vmatprep.subr.mxu0 0.0
    %339 = vmatpush1.msra.mxu0 0.0
    %340 = vmatprep.subr.mxu0 0.0
    %341 = vmatpush1.msra.mxu0 0.0
    %342 = vmatprep.subr.mxu0 0.0
    %343 = vmatpush1.msra.mxu0 0.0
    %344 = vmatprep.subr.mxu0 0.0
    %345 = vmatpush1.msra.mxu0 0.0
    %346 = vmatprep.subr.mxu0 0.0
    %347 = vmatpush1.msra.mxu0 0.0
    %348 = vmatprep.subr.mxu0 0.0
    %349 = vmatpush1.msra.mxu0 0.0
    %350 = vmatprep.subr.mxu0 0.0
    %351 = vmatpush1.msra.mxu0 0.0
    %352 = vmatprep.subr.mxu0 0.0
    %353 = vmatpush1.msra.mxu0 0.0
    %354 = vmatprep.subr.mxu0 0.0
    %355 = vmatpush1.msra.mxu0 0.0
    %356 = vmatprep.subr.mxu0 0.0
    %357 = vmatpush1.msra.mxu0 0.0
    %358 = vmatprep.subr.mxu0 0.0
    %359 = vmatpush1.msra.mxu0 0.0
    %360 = vmatprep.subr.mxu0 0.0
    %361 = vmatpush1.msra.mxu0 0.0
    %362 = vmatprep.subr.mxu0 0.0
    %363 = vmatpush1.msra.mxu0 0.0
    %364 = vmatprep.subr.mxu0 0.0
    %365 = vmatpush1.msra.mxu0 0.0
    %366 = vmatprep.subr.mxu0 0.0
    %367 = vmatpush1.msra.mxu0 0.0
    %368 = vmatprep.mubr.f32.mxu0 0.0
    %369 = vmatmul.mubr.f32.gmra.mrb[0].mxu0 %v302
    %v370 = vpop.f32.mrb[0].mxu0
    %v371 = vadd.f32 0.0, %v370
    %v372 = vpop.f32.mrb[0].mxu0
    %v373 = vadd.f32 0.0, %v372
    %374 = vdwg.mxu0
    %375 = vmatprep.subr.mxu0 %v241
    %376 = vmatpush1.msra.mxu0 %v240
    %377 = vmatprep.subr.mxu0 %v245
    %378 = vmatpush1.msra.mxu0 %v244
    %379 = vmatprep.subr.mxu0 %v249
    %380 = vmatpush1.msra.mxu0 %v248
    %381 = vmatprep.subr.mxu0 %v253
    %382 = vmatpush1.msra.mxu0 %v252
    %383 = vmatprep.subr.mxu0 %v257
    %384 = vmatpush1.msra.mxu0 %v256
    %385 = vmatprep.subr.mxu0 %v261
    %386 = vmatpush1.msra.mxu0 %v260
    %387 = vmatprep.subr.mxu0 %v265
    %388 = vmatpush1.msra.mxu0 %v264
    %389 = vmatprep.subr.mxu0 %v269
    %390 = vmatpush1.msra.mxu0 %v268
    %391 = vmatprep.subr.mxu0 %v273
    %392 = vmatpush1.msra.mxu0 %v272
    %393 = vmatprep.subr.mxu0 %v277
    %394 = vmatpush1.msra.mxu0 %v276
    %395 = vmatprep.subr.mxu0 %v281
    %396 = vmatpush1.msra.mxu0 %v280
    %397 = vmatprep.subr.mxu0 %v285
    %398 = vmatpush1.msra.mxu0 %v284
    %399 = vmatprep.subr.mxu0 %v289
    %400 = vmatpush1.msra.mxu0 %v288
    %401 = vmatprep.subr.mxu0 %v293
    %402 = vmatpush1.msra.mxu0 %v292
    %403 = vmatprep.subr.mxu0 %v297
    %404 = vmatpush1.msra.mxu0 %v296
    %405 = vmatprep.subr.mxu0 %v301
    %406 = vmatpush1.msra.mxu0 %v300
    %407 = vmatprep.subr.mxu0 0.0
    %408 = vmatpush1.msra.mxu0 0.0
    %409 = vmatprep.subr.mxu0 0.0
    %410 = vmatpush1.msra.mxu0 0.0
    %411 = vmatprep.subr.mxu0 0.0
    %412 = vmatpush1.msra.mxu0 0.0
    %413 = vmatprep.subr.mxu0 0.0
    %414 = vmatpush1.msra.mxu0 0.0
    %415 = vmatprep.subr.mxu0 0.0
    %416 = vmatpush1.msra.mxu0 0.0
    %417 = vmatprep.subr.mxu0 0.0
    %418 = vmatpush1.msra.mxu0 0.0
    %419 = vmatprep.subr.mxu0 0.0
    %420 = vmatpush1.msra.mxu0 0.0
    %421 = vmatprep.subr.mxu0 0.0
    %422 = vmatpush1.msra.mxu0 0.0
    %423 = vmatprep.subr.mxu0 0.0
    %424 = vmatpush1.msra.mxu0 0.0
    %425 = vmatprep.subr.mxu0 0.0
    %426 = vmatpush1.msra.mxu0 0.0
    %427 = vmatprep.subr.mxu0 0.0
    %428 = vmatpush1.msra.mxu0 0.0
    %429 = vmatprep.subr.mxu0 0.0
    %430 = vmatpush1.msra.mxu0 0.0
    %431 = vmatprep.subr.mxu0 0.0
    %432 = vmatpush1.msra.mxu0 0.0
    %433 = vmatprep.subr.mxu0 0.0
    %434 = vmatpush1.msra.mxu0 0.0
    %435 = vmatprep.subr.mxu0 0.0
    %436 = vmatpush1.msra.mxu0 0.0
    %437 = vmatprep.subr.mxu0 0.0
    %438 = vmatpush1.msra.mxu0 0.0
    %439 = vmatprep.mubr.f32.mxu0 0.0
    %440 = vmatmul.mubr.f32.gmra.mrb[0].mxu0 %v302
    %v441 = vpop.f32.mrb[0].mxu0
    %v442 = vadd.f32 0.0, %v441
    %v443 = vpop.f32.mrb[0].mxu0
    %v444 = vadd.f32 0.0, %v443
    %445 = vdwg.mxu0
    %v446 = vadd.f32 %v163, %v371
    %v447 = vadd.f32 %v165, %v373
    %v448 = vadd.f32 %v234, %v442
    %v449 = vadd.f32 %v236, %v444
    %v450 = vxor.u32 %v446, 2147483648
    %v451 = vmul.f32 %v450, 1.442695
    %v452 = vpow.pop %v451
    %v453 = vadd.f32 %v452, 1.0
    %v454 = vrcp.pop %v453
    %v455 = vmul.f32 1.0, %v454
    %v456 = vxor.u32 %v447, 2147483648
    %v457 = vmul.f32 %v456, 1.442695
    %v458 = vpow.pop %v457
    %v459 = vadd.f32 %v458, 1.0
    %v460 = vrcp.pop %v459
    %v461 = vmul.f32 1.0, %v460
    %v462 = vtanh.pop %v448
    %v463 = vxor.u32 %v449, 2147483648
    %v464 = vmul.f32 %v463, 1.442695
    %v465 = vpow.pop %v464
    %v466 = vadd.f32 %v465, 1.0
    %v467 = vrcp.pop %v466
    %v468 = vmul.f32 1.0, %v467
    %v469 = vmul.f32 %v461, %v303
    %v470 = vmul.f32 %v455, %v462
    %v471 = vadd.f32 %v469, %v470
    %v472 = vtanh.pop %v471
    %v473 = vmul.f32 %v468, %v472
    %474 = vmatprep.subr.mxu0 %v239
    %475 = vmatpush1.msra.mxu0 %v238
    %476 = vmatprep.subr.mxu0 %v243
    %477 = vmatpush1.msra.mxu0 %v242
    %478 = vmatprep.subr.mxu0 %v247
    %479 = vmatpush1.msra.mxu0 %v246
    %480 = vmatprep.subr.mxu0 %v251
    %481 = vmatpush1.msra.mxu0 %v250
    %482 = vmatprep.subr.mxu0 %v255
    %483 = vmatpush1.msra.mxu0 %v254
    %484 = vmatprep.subr.mxu0 %v259
    %485 = vmatpush1.msra.mxu0 %v258
    %486 = vmatprep.subr.mxu0 %v263
    %487 = vmatpush1.msra.mxu0 %v262
    %488 = vmatprep.subr.mxu0 %v267
    %489 = vmatpush1.msra.mxu0 %v266
    %490 = vmatprep.subr.mxu0 %v271
    %491 = vmatpush1.msra.mxu0 %v270
    %492 = vmatprep.subr.mxu0 %v275
    %493 = vmatpush1.msra.mxu0 %v274
    %494 = vmatprep.subr.mxu0 %v279
    %495 = vmatpush1.msra.mxu0 %v278
    %496 = vmatprep.subr.mxu0 %v283
    %497 = vmatpush1.msra.mxu0 %v282
    %498 = vmatprep.subr.mxu0 %v287
    %499 = vmatpush1.msra.mxu0 %v286
    %500 = vmatprep.subr.mxu0 %v291
    %501 = vmatpush1.msra.mxu0 %v290
    %502 = vmatprep.subr.mxu0 %v295
    %503 = vmatpush1.msra.mxu0 %v294
    %504 = vmatprep.subr.mxu0 %v299
    %505 = vmatpush1.msra.mxu0 %v298
    %506 = vmatprep.subr.mxu0 0.0
    %507 = vmatpush1.msra.mxu0 0.0
    %508 = vmatprep.subr.mxu0 0.0
    %509 = vmatpush1.msra.mxu0 0.0
    %510 = vmatprep.subr.mxu0 0.0
    %511 = vmatpush1.msra.mxu0 0.0
    %512 = vmatprep.subr.mxu0 0.0
    %513 = vmatpush1.msra.mxu0 0.0
    %514 = vmatprep.subr.mxu0 0.0
    %515 = vmatpush1.msra.mxu0 0.0
    %516 = vmatprep.subr.mxu0 0.0
    %517 = vmatpush1.msra.mxu0 0.0
    %518 = vmatprep.subr.mxu0 0.0
    %519 = vmatpush1.msra.mxu0 0.0
    %520 = vmatprep.subr.mxu0 0.0
    %521 = vmatpush1.msra.mxu0 0.0
    %522 = vmatprep.subr.mxu0 0.0
    %523 = vmatpush1.msra.mxu0 0.0
    %524 = vmatprep.subr.mxu0 0.0
    %525 = vmatpush1.msra.mxu0 0.0
    %526 = vmatprep.subr.mxu0 0.0
    %527 = vmatpush1.msra.mxu0 0.0
    %528 = vmatprep.subr.mxu0 0.0
    %529 = vmatpush1.msra.mxu0 0.0
    %530 = vmatprep.subr.mxu0 0.0
    %531 = vmatpush1.msra.mxu0 0.0
    %532 = vmatprep.subr.mxu0 0.0
    %533 = vmatpush1.msra.mxu0 0.0
    %534 = vmatprep.subr.mxu0 0.0
    %535 = vmatpush1.msra.mxu0 0.0
    %536 = vmatprep.subr.mxu0 0.0
    %537 = vmatpush1.msra.mxu0 0.0
    %538 = vmatprep.mubr.f32.mxu0 0.0
    %539 = vmatmul.mubr.f32.gmra.mrb[0].mxu0 %v473
    %v540 = vpop.f32.mrb[0].mxu0
    %v541 = vadd.f32 0.0, %v540
    %v542 = vpop.f32.mrb[0].mxu0
    %v543 = vadd.f32 0.0, %v542
    %544 = vdwg.mxu0
    %545 = vmatprep.subr.mxu0 %v241
    %546 = vmatpush1.msra.mxu0 %v240
    %547 = vmatprep.subr.mxu0 %v245
    %548 = vmatpush1.msra.mxu0 %v244
    %549 = vmatprep.subr.mxu0 %v249
    %550 = vmatpush1.msra.mxu0 %v248
    %551 = vmatprep.subr.mxu0 %v253
    %552 = vmatpush1.msra.mxu0 %v252
    %553 = vmatprep.subr.mxu0 %v257
    %554 = vmatpush1.msra.mxu0 %v256
    %555 = vmatprep.subr.mxu0 %v261
    %556 = vmatpush1.msra.mxu0 %v260
    %557 = vmatprep.subr.mxu0 %v265
    %558 = vmatpush1.msra.mxu0 %v264
    %559 = vmatprep.subr.mxu0 %v269
    %560 = vmatpush1.msra.mxu0 %v268
    %561 = vmatprep.subr.mxu0 %v273
    %562 = vmatpush1.msra.mxu0 %v272
    %563 = vmatprep.subr.mxu0 %v277
    %564 = vmatpush1.msra.mxu0 %v276
    %565 = vmatprep.subr.mxu0 %v281
    %566 = vmatpush1.msra.mxu0 %v280
    %567 = vmatprep.subr.mxu0 %v285
    %568 = vmatpush1.msra.mxu0 %v284
    %569 = vmatprep.subr.mxu0 %v289
    %570 = vmatpush1.msra.mxu0 %v288
    %571 = vmatprep.subr.mxu0 %v293
    %572 = vmatpush1.msra.mxu0 %v292
    %573 = vmatprep.subr.mxu0 %v297
    %574 = vmatpush1.msra.mxu0 %v296
    %575 = vmatprep.subr.mxu0 %v301
    %576 = vmatpush1.msra.mxu0 %v300
    %577 = vmatprep.subr.mxu0 0.0
    %578 = vmatpush1.msra.mxu0 0.0
    %579 = vmatprep.subr.mxu0 0.0
    %580 = vmatpush1.msra.mxu0 0.0
    %581 = vmatprep.subr.mxu0 0.0
    %582 = vmatpush1.msra.mxu0 0.0
    %583 = vmatprep.subr.mxu0 0.0
    %584 = vmatpush1.msra.mxu0 0.0
    %585 = vmatprep.subr.mxu0 0.0
    %586 = vmatpush1.msra.mxu0 0.0
    %587 = vmatprep.subr.mxu0 0.0
    %588 = vmatpush1.msra.mxu0 0.0
    %589 = vmatprep.subr.mxu0 0.0
    %590 = vmatpush1.msra.mxu0 0.0
    %591 = vmatprep.subr.mxu0 0.0
    %592 = vmatpush1.msra.mxu0 0.0
    %593 = vmatprep.subr.mxu0 0.0
    %594 = vmatpush1.msra.mxu0 0.0
    %595 = vmatprep.subr.mxu0 0.0
    %596 = vmatpush1.msra.mxu0 0.0
    %597 = vmatprep.subr.mxu0 0.0
    %598 = vmatpush1.msra.mxu0 0.0
    %599 = vmatprep.subr.mxu0 0.0
    %600 = vmatpush1.msra.mxu0 0.0
    %601 = vmatprep.subr.mxu0 0.0
    %602 = vmatpush1.msra.mxu0 0.0
    %603 = vmatprep.subr.mxu0 0.0
    %604 = vmatpush1.msra.mxu0 0.0
    %605 = vmatprep.subr.mxu0 0.0
    %606 = vmatpush1.msra.mxu0 0.0
    %607 = vmatprep.subr.mxu0 0.0
    %608 = vmatpush1.msra.mxu0 0.0
    %609 = vmatprep.mubr.f32.mxu0 0.0
    %610 = vmatmul.mubr.f32.gmra.mrb[0].mxu0 %v473
    %v611 = vpop.f32.mrb[0].mxu0
    %v612 = vadd.f32 0.0, %v611
    %v613 = vpop.f32.mrb[0].mxu0
    %v614 = vadd.f32 0.0, %v613
    %615 = vdwg.mxu0
    %v620 = vrot.slane %v541, 7
    %v621 = vrot.slane %v543, 7
    %v622 = vrot.slane %v612, 7
    %v623 = vrot.slane %v614, 7
    %v628 = vadd.f32 %v163, %v620
    %v629 = vadd.f32 %v165, %v621
    %v630 = vadd.f32 %v234, %v622
    %v631 = vadd.f32 %v236, %v623
    %v632 = vxor.u32 %v628, 2147483648
    %v633 = vmul.f32 %v632, 1.442695
    %v634 = vpow.pop %v633
    %v635 = vadd.f32 %v634, 1.0
    %v636 = vrcp.pop %v635
    %v637 = vmul.f32 1.0, %v636
    %v638 = vxor.u32 %v629, 2147483648
    %v639 = vmul.f32 %v638, 1.442695
    %v640 = vpow.pop %v639
    %v641 = vadd.f32 %v640, 1.0
    %v642 = vrcp.pop %v641
    %v643 = vmul.f32 1.0, %v642
    %v644 = vtanh.pop %v630
    %v645 = vxor.u32 %v631, 2147483648
    %v646 = vmul.f32 %v645, 1.442695
    %v647 = vpow.pop %v646
    %v648 = vadd.f32 %v647, 1.0
    %v649 = vrcp.pop %v648
    %v650 = vmul.f32 1.0, %v649
    %v652 = vrot.slane %v471, 7
    %v654 = vmul.f32 %v643, %v652
    %v655 = vmul.f32 %v637, %v644
    %v656 = vadd.f32 %v654, %v655
    %v657 = vtanh.pop %v656
    %v658 = vmul.f32 %v650, %v657
    %v660 = vrot.slane %v658, 1
    %662 = vmatprep.subr.mxu0 %v239
    %663 = vmatpush1.msra.mxu0 %v238
    %664 = vmatprep.subr.mxu0 %v243
    %665 = vmatpush1.msra.mxu0 %v242
    %666 = vmatprep.subr.mxu0 %v247
    %667 = vmatpush1.msra.mxu0 %v246
    %668 = vmatprep.subr.mxu0 %v251
    %669 = vmatpush1.msra.mxu0 %v250
    %670 = vmatprep.subr.mxu0 %v255
    %671 = vmatpush1.msra.mxu0 %v254
    %672 = vmatprep.subr.mxu0 %v259
    %673 = vmatpush1.msra.mxu0 %v258
    %674 = vmatprep.subr.mxu0 %v263
    %675 = vmatpush1.msra.mxu0 %v262
    %676 = vmatprep.subr.mxu0 %v267
    %677 = vmatpush1.msra.mxu0 %v266
    %678 = vmatprep.subr.mxu0 %v271
    %679 = vmatpush1.msra.mxu0 %v270
    %680 = vmatprep.subr.mxu0 %v275
    %681 = vmatpush1.msra.mxu0 %v274
    %682 = vmatprep.subr.mxu0 %v279
    %683 = vmatpush1.msra.mxu0 %v278
    %684 = vmatprep.subr.mxu0 %v283
    %685 = vmatpush1.msra.mxu0 %v282
    %686 = vmatprep.subr.mxu0 %v287
    %687 = vmatpush1.msra.mxu0 %v286
    %688 = vmatprep.subr.mxu0 %v291
    %689 = vmatpush1.msra.mxu0 %v290
    %690 = vmatprep.subr.mxu0 %v295
    %691 = vmatpush1.msra.mxu0 %v294
    %692 = vmatprep.subr.mxu0 %v299
    %693 = vmatpush1.msra.mxu0 %v298
    %694 = vmatprep.subr.mxu0 0.0
    %695 = vmatpush1.msra.mxu0 0.0
    %696 = vmatprep.subr.mxu0 0.0
    %697 = vmatpush1.msra.mxu0 0.0
    %698 = vmatprep.subr.mxu0 0.0
    %699 = vmatpush1.msra.mxu0 0.0
    %700 = vmatprep.subr.mxu0 0.0
    %701 = vmatpush1.msra.mxu0 0.0
    %702 = vmatprep.subr.mxu0 0.0
    %703 = vmatpush1.msra.mxu0 0.0
    %704 = vmatprep.subr.mxu0 0.0
    %705 = vmatpush1.msra.mxu0 0.0
    %706 = vmatprep.subr.mxu0 0.0
    %707 = vmatpush1.msra.mxu0 0.0
    %708 = vmatprep.subr.mxu0 0.0
    %709 = vmatpush1.msra.mxu0 0.0
    %710 = vmatprep.subr.mxu0 0.0
    %711 = vmatpush1.msra.mxu0 0.0
    %712 = vmatprep.subr.mxu0 0.0
    %713 = vmatpush1.msra.mxu0 0.0
    %714 = vmatprep.subr.mxu0 0.0
    %715 = vmatpush1.msra.mxu0 0.0
    %716 = vmatprep.subr.mxu0 0.0
    %717 = vmatpush1.msra.mxu0 0.0
    %718 = vmatprep.subr.mxu0 0.0
    %719 = vmatpush1.msra.mxu0 0.0
    %720 = vmatprep.subr.mxu0 0.0
    %721 = vmatpush1.msra.mxu0 0.0
    %722 = vmatprep.subr.mxu0 0.0
    %723 = vmatpush1.msra.mxu0 0.0
    %724 = vmatprep.subr.mxu0 0.0
    %725 = vmatpush1.msra.mxu0 0.0
    %726 = vmatprep.mubr.f32.mxu0 0.0
    %727 = vmatmul.mubr.f32.gmra.mrb[0].mxu0 %v660
    %v728 = vpop.f32.mrb[0].mxu0
    %v729 = vadd.f32 0.0, %v728
    %v730 = vpop.f32.mrb[0].mxu0
    %v731 = vadd.f32 0.0, %v730
    %732 = vdwg.mxu0
    %733 = vmatprep.subr.mxu0 %v241
    %734 = vmatpush1.msra.mxu0 %v240
    %735 = vmatprep.subr.mxu0 %v245
    %736 = vmatpush1.msra.mxu0 %v244
    %737 = vmatprep.subr.mxu0 %v249
    %738 = vmatpush1.msra.mxu0 %v248
    %739 = vmatprep.subr.mxu0 %v253
    %740 = vmatpush1.msra.mxu0 %v252
    %741 = vmatprep.subr.mxu0 %v257
    %742 = vmatpush1.msra.mxu0 %v256
    %743 = vmatprep.subr.mxu0 %v261
    %744 = vmatpush1.msra.mxu0 %v260
    %745 = vmatprep.subr.mxu0 %v265
    %746 = vmatpush1.msra.mxu0 %v264
    %747 = vmatprep.subr.mxu0 %v269
    %748 = vmatpush1.msra.mxu0 %v268
    %749 = vmatprep.subr.mxu0 %v273
    %750 = vmatpush1.msra.mxu0 %v272
    %751 = vmatprep.subr.mxu0 %v277
    %752 = vmatpush1.msra.mxu0 %v276
    %753 = vmatprep.subr.mxu0 %v281
    %754 = vmatpush1.msra.mxu0 %v280
    %755 = vmatprep.subr.mxu0 %v285
    %756 = vmatpush1.msra.mxu0 %v284
    %757 = vmatprep.subr.mxu0 %v289
    %758 = vmatpush1.msra.mxu0 %v288
    %759 = vmatprep.subr.mxu0 %v293
    %760 = vmatpush1.msra.mxu0 %v292
    %761 = vmatprep.subr.mxu0 %v297
    %762 = vmatpush1.msra.mxu0 %v296
    %763 = vmatprep.subr.mxu0 %v301
    %764 = vmatpush1.msra.mxu0 %v300
    %765 = vmatprep.subr.mxu0 0.0
    %766 = vmatpush1.msra.mxu0 0.0
    %767 = vmatprep.subr.mxu0 0.0
    %768 = vmatpush1.msra.mxu0 0.0
    %769 = vmatprep.subr.mxu0 0.0
    %770 = vmatpush1.msra.mxu0 0.0
    %771 = vmatprep.subr.mxu0 0.0
    %772 = vmatpush1.msra.mxu0 0.0
    %773 = vmatprep.subr.mxu0 0.0
    %774 = vmatpush1.msra.mxu0 0.0
    %775 = vmatprep.subr.mxu0 0.0
    %776 = vmatpush1.msra.mxu0 0.0
    %777 = vmatprep.subr.mxu0 0.0
    %778 = vmatpush1.msra.mxu0 0.0
    %779 = vmatprep.subr.mxu0 0.0
    %780 = vmatpush1.msra.mxu0 0.0
    %781 = vmatprep.subr.mxu0 0.0
    %782 = vmatpush1.msra.mxu0 0.0
    %783 = vmatprep.subr.mxu0 0.0
    %784 = vmatpush1.msra.mxu0 0.0
    %785 = vmatprep.subr.mxu0 0.0
    %786 = vmatpush1.msra.mxu0 0.0
    %787 = vmatprep.subr.mxu0 0.0
    %788 = vmatpush1.msra.mxu0 0.0
    %789 = vmatprep.subr.mxu0 0.0
    %790 = vmatpush1.msra.mxu0 0.0
    %791 = vmatprep.subr.mxu0 0.0
    %792 = vmatpush1.msra.mxu0 0.0
    %793 = vmatprep.subr.mxu0 0.0
    %794 = vmatpush1.msra.mxu0 0.0
    %795 = vmatprep.subr.mxu0 0.0
    %796 = vmatpush1.msra.mxu0 0.0
    %797 = vmatprep.mubr.f32.mxu0 0.0
    %798 = vmatmul.mubr.f32.gmra.mrb[0].mxu0 %v660
    %v799 = vpop.f32.mrb[0].mxu0
    %v800 = vadd.f32 0.0, %v799
    %v801 = vpop.f32.mrb[0].mxu0
    %v802 = vadd.f32 0.0, %v801
    %803 = vdwg.mxu0
    %v808 = vrot.slane %v729, 6
    %v809 = vrot.slane %v731, 6
    %v810 = vrot.slane %v800, 6
    %v811 = vrot.slane %v802, 6
    %v816 = vadd.f32 %v163, %v808
    %v817 = vadd.f32 %v165, %v809
    %v818 = vadd.f32 %v234, %v810
    %v819 = vadd.f32 %v236, %v811
    %v820 = vxor.u32 %v816, 2147483648
    %v821 = vmul.f32 %v820, 1.442695
    %v822 = vpow.pop %v821
    %v823 = vadd.f32 %v822, 1.0
    %v824 = vrcp.pop %v823
    %v825 = vmul.f32 1.0, %v824
    %v826 = vxor.u32 %v817, 2147483648
    %v827 = vmul.f32 %v826, 1.442695
    %v828 = vpow.pop %v827
    %v829 = vadd.f32 %v828, 1.0
    %v830 = vrcp.pop %v829
    %v831 = vmul.f32 1.0, %v830
    %v832 = vtanh.pop %v818
    %v833 = vxor.u32 %v819, 2147483648
    %v834 = vmul.f32 %v833, 1.442695
    %v835 = vpow.pop %v834
    %v836 = vadd.f32 %v835, 1.0
    %v837 = vrcp.pop %v836
    %v838 = vmul.f32 1.0, %v837
    %v840 = vrot.slane %v656, 7
    %v842 = vmul.f32 %v831, %v840
    %v843 = vmul.f32 %v825, %v832
    %v844 = vadd.f32 %v842, %v843
    %v845 = vtanh.pop %v844
    %v846 = vmul.f32 %v838, %v845
    %v848 = vrot.slane %v846, 2
    %850 = vmatprep.subr.mxu0 %v239
    %851 = vmatpush1.msra.mxu0 %v238
    %852 = vmatprep.subr.mxu0 %v243
    %853 = vmatpush1.msra.mxu0 %v242
    %854 = vmatprep.subr.mxu0 %v247
    %855 = vmatpush1.msra.mxu0 %v246
    %856 = vmatprep.subr.mxu0 %v251
    %857 = vmatpush1.msra.mxu0 %v250
    %858 = vmatprep.subr.mxu0 %v255
    %859 = vmatpush1.msra.mxu0 %v254
    %860 = vmatprep.subr.mxu0 %v259
    %861 = vmatpush1.msra.mxu0 %v258
    %862 = vmatprep.subr.mxu0 %v263
    %863 = vmatpush1.msra.mxu0 %v262
    %864 = vmatprep.subr.mxu0 %v267
    %865 = vmatpush1.msra.mxu0 %v266
    %866 = vmatprep.subr.mxu0 %v271
    %867 = vmatpush1.msra.mxu0 %v270
    %868 = vmatprep.subr.mxu0 %v275
    %869 = vmatpush1.msra.mxu0 %v274
    %870 = vmatprep.subr.mxu0 %v279
    %871 = vmatpush1.msra.mxu0 %v278
    %872 = vmatprep.subr.mxu0 %v283
    %873 = vmatpush1.msra.mxu0 %v282
    %874 = vmatprep.subr.mxu0 %v287
    %875 = vmatpush1.msra.mxu0 %v286
    %876 = vmatprep.subr.mxu0 %v291
    %877 = vmatpush1.msra.mxu0 %v290
    %878 = vmatprep.subr.mxu0 %v295
    %879 = vmatpush1.msra.mxu0 %v294
    %880 = vmatprep.subr.mxu0 %v299
    %881 = vmatpush1.msra.mxu0 %v298
    %882 = vmatprep.subr.mxu0 0.0
    %883 = vmatpush1.msra.mxu0 0.0
    %884 = vmatprep.subr.mxu0 0.0
    %885 = vmatpush1.msra.mxu0 0.0
    %886 = vmatprep.subr.mxu0 0.0
    %887 = vmatpush1.msra.mxu0 0.0
    %888 = vmatprep.subr.mxu0 0.0
    %889 = vmatpush1.msra.mxu0 0.0
    %890 = vmatprep.subr.mxu0 0.0
    %891 = vmatpush1.msra.mxu0 0.0
    %892 = vmatprep.subr.mxu0 0.0
    %893 = vmatpush1.msra.mxu0 0.0
    %894 = vmatprep.subr.mxu0 0.0
    %895 = vmatpush1.msra.mxu0 0.0
    %896 = vmatprep.subr.mxu0 0.0
    %897 = vmatpush1.msra.mxu0 0.0
    %898 = vmatprep.subr.mxu0 0.0
    %899 = vmatpush1.msra.mxu0 0.0
    %900 = vmatprep.subr.mxu0 0.0
    %901 = vmatpush1.msra.mxu0 0.0
    %902 = vmatprep.subr.mxu0 0.0
    %903 = vmatpush1.msra.mxu0 0.0
    %904 = vmatprep.subr.mxu0 0.0
    %905 = vmatpush1.msra.mxu0 0.0
    %906 = vmatprep.subr.mxu0 0.0
    %907 = vmatpush1.msra.mxu0 0.0
    %908 = vmatprep.subr.mxu0 0.0
    %909 = vmatpush1.msra.mxu0 0.0
    %910 = vmatprep.subr.mxu0 0.0
    %911 = vmatpush1.msra.mxu0 0.0
    %912 = vmatprep.subr.mxu0 0.0
    %913 = vmatpush1.msra.mxu0 0.0
    %914 = vmatprep.mubr.f32.mxu0 0.0
    %915 = vmatmul.mubr.f32.gmra.mrb[0].mxu0 %v848
    %v916 = vpop.f32.mrb[0].mxu0
    %v917 = vadd.f32 0.0, %v916
    %v918 = vpop.f32.mrb[0].mxu0
    %v919 = vadd.f32 0.0, %v918
    %920 = vdwg.mxu0
    %921 = vmatprep.subr.mxu0 %v241
    %922 = vmatpush1.msra.mxu0 %v240
    %923 = vmatprep.subr.mxu0 %v245
    %924 = vmatpush1.msra.mxu0 %v244
    %925 = vmatprep.subr.mxu0 %v249
    %926 = vmatpush1.msra.mxu0 %v248
    %927 = vmatprep.subr.mxu0 %v253
    %928 = vmatpush1.msra.mxu0 %v252
    %929 = vmatprep.subr.mxu0 %v257
    %930 = vmatpush1.msra.mxu0 %v256
    %931 = vmatprep.subr.mxu0 %v261
    %932 = vmatpush1.msra.mxu0 %v260
    %933 = vmatprep.subr.mxu0 %v265
    %934 = vmatpush1.msra.mxu0 %v264
    %935 = vmatprep.subr.mxu0 %v269
    %936 = vmatpush1.msra.mxu0 %v268
    %937 = vmatprep.subr.mxu0 %v273
    %938 = vmatpush1.msra.mxu0 %v272
    %939 = vmatprep.subr.mxu0 %v277
    %940 = vmatpush1.msra.mxu0 %v276
    %941 = vmatprep.subr.mxu0 %v281
    %942 = vmatpush1.msra.mxu0 %v280
    %943 = vmatprep.subr.mxu0 %v285
    %944 = vmatpush1.msra.mxu0 %v284
    %945 = vmatprep.subr.mxu0 %v289
    %946 = vmatpush1.msra.mxu0 %v288
    %947 = vmatprep.subr.mxu0 %v293
    %948 = vmatpush1.msra.mxu0 %v292
    %949 = vmatprep.subr.mxu0 %v297
    %950 = vmatpush1.msra.mxu0 %v296
    %951 = vmatprep.subr.mxu0 %v301
    %952 = vmatpush1.msra.mxu0 %v300
    %953 = vmatprep.subr.mxu0 0.0
    %954 = vmatpush1.msra.mxu0 0.0
    %955 = vmatprep.subr.mxu0 0.0
    %956 = vmatpush1.msra.mxu0 0.0
    %957 = vmatprep.subr.mxu0 0.0
    %958 = vmatpush1.msra.mxu0 0.0
    %959 = vmatprep.subr.mxu0 0.0
    %960 = vmatpush1.msra.mxu0 0.0
    %961 = vmatprep.subr.mxu0 0.0
    %962 = vmatpush1.msra.mxu0 0.0
    %963 = vmatprep.subr.mxu0 0.0
    %964 = vmatpush1.msra.mxu0 0.0
    %965 = vmatprep.subr.mxu0 0.0
    %966 = vmatpush1.msra.mxu0 0.0
    %967 = vmatprep.subr.mxu0 0.0
    %968 = vmatpush1.msra.mxu0 0.0
    %969 = vmatprep.subr.mxu0 0.0
    %970 = vmatpush1.msra.mxu0 0.0
    %971 = vmatprep.subr.mxu0 0.0
    %972 = vmatpush1.msra.mxu0 0.0
    %973 = vmatprep.subr.mxu0 0.0
    %974 = vmatpush1.msra.mxu0 0.0
    %975 = vmatprep.subr.mxu0 0.0
    %976 = vmatpush1.msra.mxu0 0.0
    %977 = vmatprep.subr.mxu0 0.0
    %978 = vmatpush1.msra.mxu0 0.0
    %979 = vmatprep.subr.mxu0 0.0
    %980 = vmatpush1.msra.mxu0 0.0
    %981 = vmatprep.subr.mxu0 0.0
    %982 = vmatpush1.msra.mxu0 0.0
    %983 = vmatprep.subr.mxu0 0.0
    %984 = vmatpush1.msra.mxu0 0.0
    %985 = vmatprep.mubr.f32.mxu0 0.0
    %986 = vmatmul.mubr.f32.gmra.mrb[0].mxu0 %v848
    %v987 = vpop.f32.mrb[0].mxu0
    %v988 = vadd.f32 0.0, %v987
    %v989 = vpop.f32.mrb[0].mxu0
    %v990 = vadd.f32 0.0, %v989
    %991 = vdwg.mxu0
    %v996 = vrot.slane %v917, 5
    %v997 = vrot.slane %v919, 5
    %v998 = vrot.slane %v988, 5
    %v999 = vrot.slane %v990, 5
    %v1004 = vadd.f32 %v163, %v996
    %v1005 = vadd.f32 %v165, %v997
    %v1006 = vadd.f32 %v234, %v998
    %v1007 = vadd.f32 %v236, %v999
    %v1008 = vxor.u32 %v1004, 2147483648
    %v1009 = vmul.f32 %v1008, 1.442695
    %v1010 = vpow.pop %v1009
    %v1011 = vadd.f32 %v1010, 1.0
    %v1012 = vrcp.pop %v1011
    %v1013 = vmul.f32 1.0, %v1012
    %v1014 = vxor.u32 %v1005, 2147483648
    %v1015 = vmul.f32 %v1014, 1.442695
    %v1016 = vpow.pop %v1015
    %v1017 = vadd.f32 %v1016, 1.0
    %v1018 = vrcp.pop %v1017
    %v1019 = vmul.f32 1.0, %v1018
    %v1020 = vtanh.pop %v1006
    %v1021 = vxor.u32 %v1007, 2147483648
    %v1022 = vmul.f32 %v1021, 1.442695
    %v1023 = vpow.pop %v1022
    %v1024 = vadd.f32 %v1023, 1.0
    %v1025 = vrcp.pop %v1024
    %v1026 = vmul.f32 1.0, %v1025
    %v1028 = vrot.slane %v844, 7
    %v1030 = vmul.f32 %v1019, %v1028
    %v1031 = vmul.f32 %v1013, %v1020
    %v1032 = vadd.f32 %v1030, %v1031
    %v1033 = vtanh.pop %v1032
    %v1034 = vmul.f32 %v1026, %v1033
    %v1036 = vrot.slane %v1034, 3
    %1038 = vmatprep.subr.mxu0 %v239
    %1039 = vmatpush1.msra.mxu0 %v238
    %1040 = vmatprep.subr.mxu0 %v243
    %1041 = vmatpush1.msra.mxu0 %v242
    %1042 = vmatprep.subr.mxu0 %v247
    %1043 = vmatpush1.msra.mxu0 %v246
    %1044 = vmatprep.subr.mxu0 %v251
    %1045 = vmatpush1.msra.mxu0 %v250
    %1046 = vmatprep.subr.mxu0 %v255
    %1047 = vmatpush1.msra.mxu0 %v254
    %1048 = vmatprep.subr.mxu0 %v259
    %1049 = vmatpush1.msra.mxu0 %v258
    %1050 = vmatprep.subr.mxu0 %v263
    %1051 = vmatpush1.msra.mxu0 %v262
    %1052 = vmatprep.subr.mxu0 %v267
    %1053 = vmatpush1.msra.mxu0 %v266
    %1054 = vmatprep.subr.mxu0 %v271
    %1055 = vmatpush1.msra.mxu0 %v270
    %1056 = vmatprep.subr.mxu0 %v275
    %1057 = vmatpush1.msra.mxu0 %v274
    %1058 = vmatprep.subr.mxu0 %v279
    %1059 = vmatpush1.msra.mxu0 %v278
    %1060 = vmatprep.subr.mxu0 %v283
    %1061 = vmatpush1.msra.mxu0 %v282
    %1062 = vmatprep.subr.mxu0 %v287
    %1063 = vmatpush1.msra.mxu0 %v286
    %1064 = vmatprep.subr.mxu0 %v291
    %1065 = vmatpush1.msra.mxu0 %v290
    %1066 = vmatprep.subr.mxu0 %v295
    %1067 = vmatpush1.msra.mxu0 %v294
    %1068 = vmatprep.subr.mxu0 %v299
    %1069 = vmatpush1.msra.mxu0 %v298
    %1070 = vmatprep.subr.mxu0 0.0
    %1071 = vmatpush1.msra.mxu0 0.0
    %1072 = vmatprep.subr.mxu0 0.0
    %1073 = vmatpush1.msra.mxu0 0.0
    %1074 = vmatprep.subr.mxu0 0.0
    %1075 = vmatpush1.msra.mxu0 0.0
    %1076 = vmatprep.subr.mxu0 0.0
    %1077 = vmatpush1.msra.mxu0 0.0
    %1078 = vmatprep.subr.mxu0 0.0
    %1079 = vmatpush1.msra.mxu0 0.0
    %1080 = vmatprep.subr.mxu0 0.0
    %1081 = vmatpush1.msra.mxu0 0.0
    %1082 = vmatprep.subr.mxu0 0.0
    %1083 = vmatpush1.msra.mxu0 0.0
    %1084 = vmatprep.subr.mxu0 0.0
    %1085 = vmatpush1.msra.mxu0 0.0
    %1086 = vmatprep.subr.mxu0 0.0
    %1087 = vmatpush1.msra.mxu0 0.0
    %1088 = vmatprep.subr.mxu0 0.0
    %1089 = vmatpush1.msra.mxu0 0.0
    %1090 = vmatprep.subr.mxu0 0.0
    %1091 = vmatpush1.msra.mxu0 0.0
    %1092 = vmatprep.subr.mxu0 0.0
    %1093 = vmatpush1.msra.mxu0 0.0
    %1094 = vmatprep.subr.mxu0 0.0
    %1095 = vmatpush1.msra.mxu0 0.0
    %1096 = vmatprep.subr.mxu0 0.0
    %1097 = vmatpush1.msra.mxu0 0.0
    %1098 = vmatprep.subr.mxu0 0.0
    %1099 = vmatpush1.msra.mxu0 0.0
    %1100 = vmatprep.subr.mxu0 0.0
    %1101 = vmatpush1.msra.mxu0 0.0
    %1102 = vmatprep.mubr.f32.mxu0 0.0
    %1103 = vmatmul.mubr.f32.gmra.mrb[0].mxu0 %v1036
    %v1104 = vpop.f32.mrb[0].mxu0
    %v1105 = vadd.f32 0.0, %v1104
    %v1106 = vpop.f32.mrb[0].mxu0
    %v1107 = vadd.f32 0.0, %v1106
    %1108 = vdwg.mxu0
    %1109 = vmatprep.subr.mxu0 %v241
    %1110 = vmatpush1.msra.mxu0 %v240
    %1111 = vmatprep.subr.mxu0 %v245
    %1112 = vmatpush1.msra.mxu0 %v244
    %1113 = vmatprep.subr.mxu0 %v249
    %1114 = vmatpush1.msra.mxu0 %v248
    %1115 = vmatprep.subr.mxu0 %v253
    %1116 = vmatpush1.msra.mxu0 %v252
    %1117 = vmatprep.subr.mxu0 %v257
    %1118 = vmatpush1.msra.mxu0 %v256
    %1119 = vmatprep.subr.mxu0 %v261
    %1120 = vmatpush1.msra.mxu0 %v260
    %1121 = vmatprep.subr.mxu0 %v265
    %1122 = vmatpush1.msra.mxu0 %v264
    %1123 = vmatprep.subr.mxu0 %v269
    %1124 = vmatpush1.msra.mxu0 %v268
    %1125 = vmatprep.subr.mxu0 %v273
    %1126 = vmatpush1.msra.mxu0 %v272
    %1127 = vmatprep.subr.mxu0 %v277
    %1128 = vmatpush1.msra.mxu0 %v276
    %1129 = vmatprep.subr.mxu0 %v281
    %1130 = vmatpush1.msra.mxu0 %v280
    %1131 = vmatprep.subr.mxu0 %v285
    %1132 = vmatpush1.msra.mxu0 %v284
    %1133 = vmatprep.subr.mxu0 %v289
    %1134 = vmatpush1.msra.mxu0 %v288
    %1135 = vmatprep.subr.mxu0 %v293
    %1136 = vmatpush1.msra.mxu0 %v292
    %1137 = vmatprep.subr.mxu0 %v297
    %1138 = vmatpush1.msra.mxu0 %v296
    %1139 = vmatprep.subr.mxu0 %v301
    %1140 = vmatpush1.msra.mxu0 %v300
    %1141 = vmatprep.subr.mxu0 0.0
    %1142 = vmatpush1.msra.mxu0 0.0
    %1143 = vmatprep.subr.mxu0 0.0
    %1144 = vmatpush1.msra.mxu0 0.0
    %1145 = vmatprep.subr.mxu0 0.0
    %1146 = vmatpush1.msra.mxu0 0.0
    %1147 = vmatprep.subr.mxu0 0.0
    %1148 = vmatpush1.msra.mxu0 0.0
    %1149 = vmatprep.subr.mxu0 0.0
    %1150 = vmatpush1.msra.mxu0 0.0
    %1151 = vmatprep.subr.mxu0 0.0
    %1152 = vmatpush1.msra.mxu0 0.0
    %1153 = vmatprep.subr.mxu0 0.0
    %1154 = vmatpush1.msra.mxu0 0.0
    %1155 = vmatprep.subr.mxu0 0.0
    %1156 = vmatpush1.msra.mxu0 0.0
    %1157 = vmatprep.subr.mxu0 0.0
    %1158 = vmatpush1.msra.mxu0 0.0
    %1159 = vmatprep.subr.mxu0 0.0
    %1160 = vmatpush1.msra.mxu0 0.0
    %1161 = vmatprep.subr.mxu0 0.0
    %1162 = vmatpush1.msra.mxu0 0.0
    %1163 = vmatprep.subr.mxu0 0.0
    %1164 = vmatpush1.msra.mxu0 0.0
    %1165 = vmatprep.subr.mxu0 0.0
    %1166 = vmatpush1.msra.mxu0 0.0
    %1167 = vmatprep.subr.mxu0 0.0
    %1168 = vmatpush1.msra.mxu0 0.0
    %1169 = vmatprep.subr.mxu0 0.0
    %1170 = vmatpush1.msra.mxu0 0.0
    %1171 = vmatprep.subr.mxu0 0.0
    %1172 = vmatpush1.msra.mxu0 0.0
    %1173 = vmatprep.mubr.f32.mxu0 0.0
    %1174 = vmatmul.mubr.f32.gmra.mrb[0].mxu0 %v1036
    %v1175 = vpop.f32.mrb[0].mxu0
    %v1176 = vadd.f32 0.0, %v1175
    %v1177 = vpop.f32.mrb[0].mxu0
    %v1178 = vadd.f32 0.0, %v1177
    %1179 = vdwg.mxu0
    %v1184 = vrot.slane %v1105, 4
    %v1185 = vrot.slane %v1107, 4
    %v1186 = vrot.slane %v1176, 4
    %v1187 = vrot.slane %v1178, 4
    %v1192 = vadd.f32 %v163, %v1184
    %v1193 = vadd.f32 %v165, %v1185
    %v1194 = vadd.f32 %v234, %v1186
    %v1195 = vadd.f32 %v236, %v1187
    %v1196 = vxor.u32 %v1192, 2147483648
    %v1197 = vmul.f32 %v1196, 1.442695
    %v1198 = vpow.pop %v1197
    %v1199 = vadd.f32 %v1198, 1.0
    %v1200 = vrcp.pop %v1199
    %v1201 = vmul.f32 1.0, %v1200
    %v1202 = vxor.u32 %v1193, 2147483648
    %v1203 = vmul.f32 %v1202, 1.442695
    %v1204 = vpow.pop %v1203
    %v1205 = vadd.f32 %v1204, 1.0
    %v1206 = vrcp.pop %v1205
    %v1207 = vmul.f32 1.0, %v1206
    %v1208 = vtanh.pop %v1194
    %v1209 = vxor.u32 %v1195, 2147483648
    %v1210 = vmul.f32 %v1209, 1.442695
    %v1211 = vpow.pop %v1210
    %v1212 = vadd.f32 %v1211, 1.0
    %v1213 = vrcp.pop %v1212
    %v1214 = vmul.f32 1.0, %v1213
    %v1216 = vrot.slane %v1032, 7
    %v1218 = vmul.f32 %v1207, %v1216
    %v1219 = vmul.f32 %v1201, %v1208
    %v1220 = vadd.f32 %v1218, %v1219
    %v1221 = vtanh.pop %v1220
    %v1222 = vmul.f32 %v1214, %v1221
    %v1224 = vrot.slane %v1222, 4
    %1226 = vmatprep.subr.mxu0 %v239
    %1227 = vmatpush1.msra.mxu0 %v238
    %1228 = vmatprep.subr.mxu0 %v243
    %1229 = vmatpush1.msra.mxu0 %v242
    %1230 = vmatprep.subr.mxu0 %v247
    %1231 = vmatpush1.msra.mxu0 %v246
    %1232 = vmatprep.subr.mxu0 %v251
    %1233 = vmatpush1.msra.mxu0 %v250
    %1234 = vmatprep.subr.mxu0 %v255
    %1235 = vmatpush1.msra.mxu0 %v254
    %1236 = vmatprep.subr.mxu0 %v259
    %1237 = vmatpush1.msra.mxu0 %v258
    %1238 = vmatprep.subr.mxu0 %v263
    %1239 = vmatpush1.msra.mxu0 %v262
    %1240 = vmatprep.subr.mxu0 %v267
    %1241 = vmatpush1.msra.mxu0 %v266
    %1242 = vmatprep.subr.mxu0 %v271
    %1243 = vmatpush1.msra.mxu0 %v270
    %1244 = vmatprep.subr.mxu0 %v275
    %1245 = vmatpush1.msra.mxu0 %v274
    %1246 = vmatprep.subr.mxu0 %v279
    %1247 = vmatpush1.msra.mxu0 %v278
    %1248 = vmatprep.subr.mxu0 %v283
    %1249 = vmatpush1.msra.mxu0 %v282
    %1250 = vmatprep.subr.mxu0 %v287
    %1251 = vmatpush1.msra.mxu0 %v286
    %1252 = vmatprep.subr.mxu0 %v291
    %1253 = vmatpush1.msra.mxu0 %v290
    %1254 = vmatprep.subr.mxu0 %v295
    %1255 = vmatpush1.msra.mxu0 %v294
    %1256 = vmatprep.subr.mxu0 %v299
    %1257 = vmatpush1.msra.mxu0 %v298
    %1258 = vmatprep.subr.mxu0 0.0
    %1259 = vmatpush1.msra.mxu0 0.0
    %1260 = vmatprep.subr.mxu0 0.0
    %1261 = vmatpush1.msra.mxu0 0.0
    %1262 = vmatprep.subr.mxu0 0.0
    %1263 = vmatpush1.msra.mxu0 0.0
    %1264 = vmatprep.subr.mxu0 0.0
    %1265 = vmatpush1.msra.mxu0 0.0
    %1266 = vmatprep.subr.mxu0 0.0
    %1267 = vmatpush1.msra.mxu0 0.0
    %1268 = vmatprep.subr.mxu0 0.0
    %1269 = vmatpush1.msra.mxu0 0.0
    %1270 = vmatprep.subr.mxu0 0.0
    %1271 = vmatpush1.msra.mxu0 0.0
    %1272 = vmatprep.subr.mxu0 0.0
    %1273 = vmatpush1.msra.mxu0 0.0
    %1274 = vmatprep.subr.mxu0 0.0
    %1275 = vmatpush1.msra.mxu0 0.0
    %1276 = vmatprep.subr.mxu0 0.0
    %1277 = vmatpush1.msra.mxu0 0.0
    %1278 = vmatprep.subr.mxu0 0.0
    %1279 = vmatpush1.msra.mxu0 0.0
    %1280 = vmatprep.subr.mxu0 0.0
    %1281 = vmatpush1.msra.mxu0 0.0
    %1282 = vmatprep.subr.mxu0 0.0
    %1283 = vmatpush1.msra.mxu0 0.0
    %1284 = vmatprep.subr.mxu0 0.0
    %1285 = vmatpush1.msra.mxu0 0.0
    %1286 = vmatprep.subr.mxu0 0.0
    %1287 = vmatpush1.msra.mxu0 0.0
    %1288 = vmatprep.subr.mxu0 0.0
    %1289 = vmatpush1.msra.mxu0 0.0
    %1290 = vmatprep.mubr.f32.mxu0 0.0
    %1291 = vmatmul.mubr.f32.gmra.mrb[0].mxu0 %v1224
    %v1292 = vpop.f32.mrb[0].mxu0
    %v1293 = vadd.f32 0.0, %v1292
    %v1294 = vpop.f32.mrb[0].mxu0
    %v1295 = vadd.f32 0.0, %v1294
    %1296 = vdwg.mxu0
    %1297 = vmatprep.subr.mxu0 %v241
    %1298 = vmatpush1.msra.mxu0 %v240
    %1299 = vmatprep.subr.mxu0 %v245
    %1300 = vmatpush1.msra.mxu0 %v244
    %1301 = vmatprep.subr.mxu0 %v249
    %1302 = vmatpush1.msra.mxu0 %v248
    %1303 = vmatprep.subr.mxu0 %v253
    %1304 = vmatpush1.msra.mxu0 %v252
    %1305 = vmatprep.subr.mxu0 %v257
    %1306 = vmatpush1.msra.mxu0 %v256
    %1307 = vmatprep.subr.mxu0 %v261
    %1308 = vmatpush1.msra.mxu0 %v260
    %1309 = vmatprep.subr.mxu0 %v265
    %1310 = vmatpush1.msra.mxu0 %v264
    %1311 = vmatprep.subr.mxu0 %v269
    %1312 = vmatpush1.msra.mxu0 %v268
    %1313 = vmatprep.subr.mxu0 %v273
    %1314 = vmatpush1.msra.mxu0 %v272
    %1315 = vmatprep.subr.mxu0 %v277
    %1316 = vmatpush1.msra.mxu0 %v276
    %1317 = vmatprep.subr.mxu0 %v281
    %1318 = vmatpush1.msra.mxu0 %v280
    %1319 = vmatprep.subr.mxu0 %v285
    %1320 = vmatpush1.msra.mxu0 %v284
    %1321 = vmatprep.subr.mxu0 %v289
    %1322 = vmatpush1.msra.mxu0 %v288
    %1323 = vmatprep.subr.mxu0 %v293
    %1324 = vmatpush1.msra.mxu0 %v292
    %1325 = vmatprep.subr.mxu0 %v297
    %1326 = vmatpush1.msra.mxu0 %v296
    %1327 = vmatprep.subr.mxu0 %v301
    %1328 = vmatpush1.msra.mxu0 %v300
    %1329 = vmatprep.subr.mxu0 0.0
    %1330 = vmatpush1.msra.mxu0 0.0
    %1331 = vmatprep.subr.mxu0 0.0
    %1332 = vmatpush1.msra.mxu0 0.0
    %1333 = vmatprep.subr.mxu0 0.0
    %1334 = vmatpush1.msra.mxu0 0.0
    %1335 = vmatprep.subr.mxu0 0.0
    %1336 = vmatpush1.msra.mxu0 0.0
    %1337 = vmatprep.subr.mxu0 0.0
    %1338 = vmatpush1.msra.mxu0 0.0
    %1339 = vmatprep.subr.mxu0 0.0
    %1340 = vmatpush1.msra.mxu0 0.0
    %1341 = vmatprep.subr.mxu0 0.0
    %1342 = vmatpush1.msra.mxu0 0.0
    %1343 = vmatprep.subr.mxu0 0.0
    %1344 = vmatpush1.msra.mxu0 0.0
    %1345 = vmatprep.subr.mxu0 0.0
    %1346 = vmatpush1.msra.mxu0 0.0
    %1347 = vmatprep.subr.mxu0 0.0
    %1348 = vmatpush1.msra.mxu0 0.0
    %1349 = vmatprep.subr.mxu0 0.0
    %1350 = vmatpush1.msra.mxu0 0.0
    %1351 = vmatprep.subr.mxu0 0.0
    %1352 = vmatpush1.msra.mxu0 0.0
    %1353 = vmatprep.subr.mxu0 0.0
    %1354 = vmatpush1.msra.mxu0 0.0
    %1355 = vmatprep.subr.mxu0 0.0
    %1356 = vmatpush1.msra.mxu0 0.0
    %1357 = vmatprep.subr.mxu0 0.0
    %1358 = vmatpush1.msra.mxu0 0.0
    %1359 = vmatprep.subr.mxu0 0.0
    %1360 = vmatpush1.msra.mxu0 0.0
    %1361 = vmatprep.mubr.f32.mxu0 0.0
    %1362 = vmatmul.mubr.f32.gmra.mrb[0].mxu0 %v1224
    %v1363 = vpop.f32.mrb[0].mxu0
    %v1364 = vadd.f32 0.0, %v1363
    %v1365 = vpop.f32.mrb[0].mxu0
    %v1366 = vadd.f32 0.0, %v1365
    %1367 = vdwg.mxu0
    %v1372 = vrot.slane %v1293, 3
    %v1373 = vrot.slane %v1295, 3
    %v1374 = vrot.slane %v1364, 3
    %v1375 = vrot.slane %v1366, 3
    %v1380 = vadd.f32 %v163, %v1372
    %v1381 = vadd.f32 %v165, %v1373
    %v1382 = vadd.f32 %v234, %v1374
    %v1383 = vadd.f32 %v236, %v1375
    %v1384 = vxor.u32 %v1380, 2147483648
    %v1385 = vmul.f32 %v1384, 1.442695
    %v1386 = vpow.pop %v1385
    %v1387 = vadd.f32 %v1386, 1.0
    %v1388 = vrcp.pop %v1387
    %v1389 = vmul.f32 1.0, %v1388
    %v1390 = vxor.u32 %v1381, 2147483648
    %v1391 = vmul.f32 %v1390, 1.442695
    %v1392 = vpow.pop %v1391
    %v1393 = vadd.f32 %v1392, 1.0
    %v1394 = vrcp.pop %v1393
    %v1395 = vmul.f32 1.0, %v1394
    %v1396 = vtanh.pop %v1382
    %v1397 = vxor.u32 %v1383, 2147483648
    %v1398 = vmul.f32 %v1397, 1.442695
    %v1399 = vpow.pop %v1398
    %v1400 = vadd.f32 %v1399, 1.0
    %v1401 = vrcp.pop %v1400
    %v1402 = vmul.f32 1.0, %v1401
    %v1404 = vrot.slane %v1220, 7
    %v1406 = vmul.f32 %v1395, %v1404
    %v1407 = vmul.f32 %v1389, %v1396
    %v1408 = vadd.f32 %v1406, %v1407
    %v1409 = vtanh.pop %v1408
    %v1410 = vmul.f32 %v1402, %v1409
    %v1412 = vrot.slane %v1410, 5
    %1414 = vmatprep.subr.mxu0 %v239
    %1415 = vmatpush1.msra.mxu0 %v238
    %1416 = vmatprep.subr.mxu0 %v243
    %1417 = vmatpush1.msra.mxu0 %v242
    %1418 = vmatprep.subr.mxu0 %v247
    %1419 = vmatpush1.msra.mxu0 %v246
    %1420 = vmatprep.subr.mxu0 %v251
    %1421 = vmatpush1.msra.mxu0 %v250
    %1422 = vmatprep.subr.mxu0 %v255
    %1423 = vmatpush1.msra.mxu0 %v254
    %1424 = vmatprep.subr.mxu0 %v259
    %1425 = vmatpush1.msra.mxu0 %v258
    %1426 = vmatprep.subr.mxu0 %v263
    %1427 = vmatpush1.msra.mxu0 %v262
    %1428 = vmatprep.subr.mxu0 %v267
    %1429 = vmatpush1.msra.mxu0 %v266
    %1430 = vmatprep.subr.mxu0 %v271
    %1431 = vmatpush1.msra.mxu0 %v270
    %1432 = vmatprep.subr.mxu0 %v275
    %1433 = vmatpush1.msra.mxu0 %v274
    %1434 = vmatprep.subr.mxu0 %v279
    %1435 = vmatpush1.msra.mxu0 %v278
    %1436 = vmatprep.subr.mxu0 %v283
    %1437 = vmatpush1.msra.mxu0 %v282
    %1438 = vmatprep.subr.mxu0 %v287
    %1439 = vmatpush1.msra.mxu0 %v286
    %1440 = vmatprep.subr.mxu0 %v291
    %1441 = vmatpush1.msra.mxu0 %v290
    %1442 = vmatprep.subr.mxu0 %v295
    %1443 = vmatpush1.msra.mxu0 %v294
    %1444 = vmatprep.subr.mxu0 %v299
    %1445 = vmatpush1.msra.mxu0 %v298
    %1446 = vmatprep.subr.mxu0 0.0
    %1447 = vmatpush1.msra.mxu0 0.0
    %1448 = vmatprep.subr.mxu0 0.0
    %1449 = vmatpush1.msra.mxu0 0.0
    %1450 = vmatprep.subr.mxu0 0.0
    %1451 = vmatpush1.msra.mxu0 0.0
    %1452 = vmatprep.subr.mxu0 0.0
    %1453 = vmatpush1.msra.mxu0 0.0
    %1454 = vmatprep.subr.mxu0 0.0
    %1455 = vmatpush1.msra.mxu0 0.0
    %1456 = vmatprep.subr.mxu0 0.0
    %1457 = vmatpush1.msra.mxu0 0.0
    %1458 = vmatprep.subr.mxu0 0.0
    %1459 = vmatpush1.msra.mxu0 0.0
    %1460 = vmatprep.subr.mxu0 0.0
    %1461 = vmatpush1.msra.mxu0 0.0
    %1462 = vmatprep.subr.mxu0 0.0
    %1463 = vmatpush1.msra.mxu0 0.0
    %1464 = vmatprep.subr.mxu0 0.0
    %1465 = vmatpush1.msra.mxu0 0.0
    %1466 = vmatprep.subr.mxu0 0.0
    %1467 = vmatpush1.msra.mxu0 0.0
    %1468 = vmatprep.subr.mxu0 0.0
    %1469 = vmatpush1.msra.mxu0 0.0
    %1470 = vmatprep.subr.mxu0 0.0
    %1471 = vmatpush1.msra.mxu0 0.0
    %1472 = vmatprep.subr.mxu0 0.0
    %1473 = vmatpush1.msra.mxu0 0.0
    %1474 = vmatprep.subr.mxu0 0.0
    %1475 = vmatpush1.msra.mxu0 0.0
    %1476 = vmatprep.subr.mxu0 0.0
    %1477 = vmatpush1.msra.mxu0 0.0
    %1478 = vmatprep.mubr.f32.mxu0 0.0
    %1479 = vmatmul.mubr.f32.gmra.mrb[0].mxu0 %v1412
    %v1480 = vpop.f32.mrb[0].mxu0
    %v1481 = vadd.f32 0.0, %v1480
    %v1482 = vpop.f32.mrb[0].mxu0
    %v1483 = vadd.f32 0.0, %v1482
    %1484 = vdwg.mxu0
    %1485 = vmatprep.subr.mxu0 %v241
    %1486 = vmatpush1.msra.mxu0 %v240
    %1487 = vmatprep.subr.mxu0 %v245
    %1488 = vmatpush1.msra.mxu0 %v244
    %1489 = vmatprep.subr.mxu0 %v249
    %1490 = vmatpush1.msra.mxu0 %v248
    %1491 = vmatprep.subr.mxu0 %v253
    %1492 = vmatpush1.msra.mxu0 %v252
    %1493 = vmatprep.subr.mxu0 %v257
    %1494 = vmatpush1.msra.mxu0 %v256
    %1495 = vmatprep.subr.mxu0 %v261
    %1496 = vmatpush1.msra.mxu0 %v260
    %1497 = vmatprep.subr.mxu0 %v265
    %1498 = vmatpush1.msra.mxu0 %v264
    %1499 = vmatprep.subr.mxu0 %v269
    %1500 = vmatpush1.msra.mxu0 %v268
    %1501 = vmatprep.subr.mxu0 %v273
    %1502 = vmatpush1.msra.mxu0 %v272
    %1503 = vmatprep.subr.mxu0 %v277
    %1504 = vmatpush1.msra.mxu0 %v276
    %1505 = vmatprep.subr.mxu0 %v281
    %1506 = vmatpush1.msra.mxu0 %v280
    %1507 = vmatprep.subr.mxu0 %v285
    %1508 = vmatpush1.msra.mxu0 %v284
    %1509 = vmatprep.subr.mxu0 %v289
    %1510 = vmatpush1.msra.mxu0 %v288
    %1511 = vmatprep.subr.mxu0 %v293
    %1512 = vmatpush1.msra.mxu0 %v292
    %1513 = vmatprep.subr.mxu0 %v297
    %1514 = vmatpush1.msra.mxu0 %v296
    %1515 = vmatprep.subr.mxu0 %v301
    %1516 = vmatpush1.msra.mxu0 %v300
    %1517 = vmatprep.subr.mxu0 0.0
    %1518 = vmatpush1.msra.mxu0 0.0
    %1519 = vmatprep.subr.mxu0 0.0
    %1520 = vmatpush1.msra.mxu0 0.0
    %1521 = vmatprep.subr.mxu0 0.0
    %1522 = vmatpush1.msra.mxu0 0.0
    %1523 = vmatprep.subr.mxu0 0.0
    %1524 = vmatpush1.msra.mxu0 0.0
    %1525 = vmatprep.subr.mxu0 0.0
    %1526 = vmatpush1.msra.mxu0 0.0
    %1527 = vmatprep.subr.mxu0 0.0
    %1528 = vmatpush1.msra.mxu0 0.0
    %1529 = vmatprep.subr.mxu0 0.0
    %1530 = vmatpush1.msra.mxu0 0.0
    %1531 = vmatprep.subr.mxu0 0.0
    %1532 = vmatpush1.msra.mxu0 0.0
    %1533 = vmatprep.subr.mxu0 0.0
    %1534 = vmatpush1.msra.mxu0 0.0
    %1535 = vmatprep.subr.mxu0 0.0
    %1536 = vmatpush1.msra.mxu0 0.0
    %1537 = vmatprep.subr.mxu0 0.0
    %1538 = vmatpush1.msra.mxu0 0.0
    %1539 = vmatprep.subr.mxu0 0.0
    %1540 = vmatpush1.msra.mxu0 0.0
    %1541 = vmatprep.subr.mxu0 0.0
    %1542 = vmatpush1.msra.mxu0 0.0
    %1543 = vmatprep.subr.mxu0 0.0
    %1544 = vmatpush1.msra.mxu0 0.0
    %1545 = vmatprep.subr.mxu0 0.0
    %1546 = vmatpush1.msra.mxu0 0.0
    %1547 = vmatprep.subr.mxu0 0.0
    %1548 = vmatpush1.msra.mxu0 0.0
    %1549 = vmatprep.mubr.f32.mxu0 0.0
    %1550 = vmatmul.mubr.f32.gmra.mrb[0].mxu0 %v1412
    %v1551 = vpop.f32.mrb[0].mxu0
    %v1552 = vadd.f32 0.0, %v1551
    %v1553 = vpop.f32.mrb[0].mxu0
    %v1554 = vadd.f32 0.0, %v1553
    %1555 = vdwg.mxu0
    %v1560 = vrot.slane %v1481, 2
    %v1561 = vrot.slane %v1483, 2
    %v1562 = vrot.slane %v1552, 2
    %v1563 = vrot.slane %v1554, 2
    %v1568 = vadd.f32 %v163, %v1560
    %v1569 = vadd.f32 %v165, %v1561
    %v1570 = vadd.f32 %v234, %v1562
    %v1571 = vadd.f32 %v236, %v1563
    %v1572 = vxor.u32 %v1568, 2147483648
    %v1573 = vmul.f32 %v1572, 1.442695
    %v1574 = vpow.pop %v1573
    %v1575 = vadd.f32 %v1574, 1.0
    %v1576 = vrcp.pop %v1575
    %v1577 = vmul.f32 1.0, %v1576
    %v1578 = vxor.u32 %v1569, 2147483648
    %v1579 = vmul.f32 %v1578, 1.442695
    %v1580 = vpow.pop %v1579
    %v1581 = vadd.f32 %v1580, 1.0
    %v1582 = vrcp.pop %v1581
    %v1583 = vmul.f32 1.0, %v1582
    %v1584 = vtanh.pop %v1570
    %v1585 = vxor.u32 %v1571, 2147483648
    %v1586 = vmul.f32 %v1585, 1.442695
    %v1587 = vpow.pop %v1586
    %v1588 = vadd.f32 %v1587, 1.0
    %v1589 = vrcp.pop %v1588
    %v1590 = vmul.f32 1.0, %v1589
    %v1592 = vrot.slane %v1408, 7
    %v1594 = vmul.f32 %v1583, %v1592
    %v1595 = vmul.f32 %v1577, %v1584
    %v1596 = vadd.f32 %v1594, %v1595
    %v1597 = vtanh.pop %v1596
    %v1598 = vmul.f32 %v1590, %v1597
    %v1600 = vrot.slane %v1598, 6
    %1602 = vmatprep.subr.mxu0 %v239
    %1603 = vmatpush1.msra.mxu0 %v238
    %1604 = vmatprep.subr.mxu0 %v243
    %1605 = vmatpush1.msra.mxu0 %v242
    %1606 = vmatprep.subr.mxu0 %v247
    %1607 = vmatpush1.msra.mxu0 %v246
    %1608 = vmatprep.subr.mxu0 %v251
    %1609 = vmatpush1.msra.mxu0 %v250
    %1610 = vmatprep.subr.mxu0 %v255
    %1611 = vmatpush1.msra.mxu0 %v254
    %1612 = vmatprep.subr.mxu0 %v259
    %1613 = vmatpush1.msra.mxu0 %v258
    %1614 = vmatprep.subr.mxu0 %v263
    %1615 = vmatpush1.msra.mxu0 %v262
    %1616 = vmatprep.subr.mxu0 %v267
    %1617 = vmatpush1.msra.mxu0 %v266
    %1618 = vmatprep.subr.mxu0 %v271
    %1619 = vmatpush1.msra.mxu0 %v270
    %1620 = vmatprep.subr.mxu0 %v275
    %1621 = vmatpush1.msra.mxu0 %v274
    %1622 = vmatprep.subr.mxu0 %v279
    %1623 = vmatpush1.msra.mxu0 %v278
    %1624 = vmatprep.subr.mxu0 %v283
    %1625 = vmatpush1.msra.mxu0 %v282
    %1626 = vmatprep.subr.mxu0 %v287
    %1627 = vmatpush1.msra.mxu0 %v286
    %1628 = vmatprep.subr.mxu0 %v291
    %1629 = vmatpush1.msra.mxu0 %v290
    %1630 = vmatprep.subr.mxu0 %v295
    %1631 = vmatpush1.msra.mxu0 %v294
    %1632 = vmatprep.subr.mxu0 %v299
    %1633 = vmatpush1.msra.mxu0 %v298
    %1634 = vmatprep.subr.mxu0 0.0
    %1635 = vmatpush1.msra.mxu0 0.0
    %1636 = vmatprep.subr.mxu0 0.0
    %1637 = vmatpush1.msra.mxu0 0.0
    %1638 = vmatprep.subr.mxu0 0.0
    %1639 = vmatpush1.msra.mxu0 0.0
    %1640 = vmatprep.subr.mxu0 0.0
    %1641 = vmatpush1.msra.mxu0 0.0
    %1642 = vmatprep.subr.mxu0 0.0
    %1643 = vmatpush1.msra.mxu0 0.0
    %1644 = vmatprep.subr.mxu0 0.0
    %1645 = vmatpush1.msra.mxu0 0.0
    %1646 = vmatprep.subr.mxu0 0.0
    %1647 = vmatpush1.msra.mxu0 0.0
    %1648 = vmatprep.subr.mxu0 0.0
    %1649 = vmatpush1.msra.mxu0 0.0
    %1650 = vmatprep.subr.mxu0 0.0
    %1651 = vmatpush1.msra.mxu0 0.0
    %1652 = vmatprep.subr.mxu0 0.0
    %1653 = vmatpush1.msra.mxu0 0.0
    %1654 = vmatprep.subr.mxu0 0.0
    %1655 = vmatpush1.msra.mxu0 0.0
    %1656 = vmatprep.subr.mxu0 0.0
    %1657 = vmatpush1.msra.mxu0 0.0
    %1658 = vmatprep.subr.mxu0 0.0
    %1659 = vmatpush1.msra.mxu0 0.0
    %1660 = vmatprep.subr.mxu0 0.0
    %1661 = vmatpush1.msra.mxu0 0.0
    %1662 = vmatprep.subr.mxu0 0.0
    %1663 = vmatpush1.msra.mxu0 0.0
    %1664 = vmatprep.subr.mxu0 0.0
    %1665 = vmatpush1.msra.mxu0 0.0
    %1666 = vmatprep.mubr.f32.mxu0 0.0
    %1667 = vmatmul.mubr.f32.gmra.mrb[0].mxu0 %v1600
    %v1668 = vpop.f32.mrb[0].mxu0
    %v1669 = vadd.f32 0.0, %v1668
    %v1670 = vpop.f32.mrb[0].mxu0
    %v1671 = vadd.f32 0.0, %v1670
    %1672 = vdwg.mxu0
    %1673 = vmatprep.subr.mxu0 %v241
    %1674 = vmatpush1.msra.mxu0 %v240
    %1675 = vmatprep.subr.mxu0 %v245
    %1676 = vmatpush1.msra.mxu0 %v244
    %1677 = vmatprep.subr.mxu0 %v249
    %1678 = vmatpush1.msra.mxu0 %v248
    %1679 = vmatprep.subr.mxu0 %v253
    %1680 = vmatpush1.msra.mxu0 %v252
    %1681 = vmatprep.subr.mxu0 %v257
    %1682 = vmatpush1.msra.mxu0 %v256
    %1683 = vmatprep.subr.mxu0 %v261
    %1684 = vmatpush1.msra.mxu0 %v260
    %1685 = vmatprep.subr.mxu0 %v265
    %1686 = vmatpush1.msra.mxu0 %v264
    %1687 = vmatprep.subr.mxu0 %v269
    %1688 = vmatpush1.msra.mxu0 %v268
    %1689 = vmatprep.subr.mxu0 %v273
    %1690 = vmatpush1.msra.mxu0 %v272
    %1691 = vmatprep.subr.mxu0 %v277
    %1692 = vmatpush1.msra.mxu0 %v276
    %1693 = vmatprep.subr.mxu0 %v281
    %1694 = vmatpush1.msra.mxu0 %v280
    %1695 = vmatprep.subr.mxu0 %v285
    %1696 = vmatpush1.msra.mxu0 %v284
    %1697 = vmatprep.subr.mxu0 %v289
    %1698 = vmatpush1.msra.mxu0 %v288
    %1699 = vmatprep.subr.mxu0 %v293
    %1700 = vmatpush1.msra.mxu0 %v292
    %1701 = vmatprep.subr.mxu0 %v297
    %1702 = vmatpush1.msra.mxu0 %v296
    %1703 = vmatprep.subr.mxu0 %v301
    %1704 = vmatpush1.msra.mxu0 %v300
    %1705 = vmatprep.subr.mxu0 0.0
    %1706 = vmatpush1.msra.mxu0 0.0
    %1707 = vmatprep.subr.mxu0 0.0
    %1708 = vmatpush1.msra.mxu0 0.0
    %1709 = vmatprep.subr.mxu0 0.0
    %1710 = vmatpush1.msra.mxu0 0.0
    %1711 = vmatprep.subr.mxu0 0.0
    %1712 = vmatpush1.msra.mxu0 0.0
    %1713 = vmatprep.subr.mxu0 0.0
    %1714 = vmatpush1.msra.mxu0 0.0
    %1715 = vmatprep.subr.mxu0 0.0
    %1716 = vmatpush1.msra.mxu0 0.0
    %1717 = vmatprep.subr.mxu0 0.0
    %1718 = vmatpush1.msra.mxu0 0.0
    %1719 = vmatprep.subr.mxu0 0.0
    %1720 = vmatpush1.msra.mxu0 0.0
    %1721 = vmatprep.subr.mxu0 0.0
    %1722 = vmatpush1.msra.mxu0 0.0
    %1723 = vmatprep.subr.mxu0 0.0
    %1724 = vmatpush1.msra.mxu0 0.0
    %1725 = vmatprep.subr.mxu0 0.0
    %1726 = vmatpush1.msra.mxu0 0.0
    %1727 = vmatprep.subr.mxu0 0.0
    %1728 = vmatpush1.msra.mxu0 0.0
    %1729 = vmatprep.subr.mxu0 0.0
    %1730 = vmatpush1.msra.mxu0 0.0
    %1731 = vmatprep.subr.mxu0 0.0
    %1732 = vmatpush1.msra.mxu0 0.0
    %1733 = vmatprep.subr.mxu0 0.0
    %1734 = vmatpush1.msra.mxu0 0.0
    %1735 = vmatprep.subr.mxu0 0.0
    %1736 = vmatpush1.msra.mxu0 0.0
    %1737 = vmatprep.mubr.f32.mxu0 0.0
    %1738 = vmatmul.mubr.f32.gmra.mrb[0].mxu0 %v1600
    %v1739 = vpop.f32.mrb[0].mxu0
    %v1740 = vadd.f32 0.0, %v1739
    %v1741 = vpop.f32.mrb[0].mxu0
    %v1742 = vadd.f32 0.0, %v1741
    %1743 = vdwg.mxu0
    %v1748 = vrot.slane %v1669, 1
    %v1749 = vrot.slane %v1671, 1
    %v1750 = vrot.slane %v1740, 1
    %v1751 = vrot.slane %v1742, 1
    %v1756 = vadd.f32 %v163, %v1748
    %v1757 = vadd.f32 %v165, %v1749
    %v1758 = vadd.f32 %v234, %v1750
    %v1759 = vadd.f32 %v236, %v1751
    %v1760 = vxor.u32 %v1756, 2147483648
    %v1761 = vmul.f32 %v1760, 1.442695
    %v1762 = vpow.pop %v1761
    %v1763 = vadd.f32 %v1762, 1.0
    %v1764 = vrcp.pop %v1763
    %v1765 = vmul.f32 1.0, %v1764
    %v1766 = vxor.u32 %v1757, 2147483648
    %v1767 = vmul.f32 %v1766, 1.442695
    %v1768 = vpow.pop %v1767
    %v1769 = vadd.f32 %v1768, 1.0
    %v1770 = vrcp.pop %v1769
    %v1771 = vmul.f32 1.0, %v1770
    %v1772 = vtanh.pop %v1758
    %v1773 = vxor.u32 %v1759, 2147483648
    %v1774 = vmul.f32 %v1773, 1.442695
    %v1775 = vpow.pop %v1774
    %v1776 = vadd.f32 %v1775, 1.0
    %v1777 = vrcp.pop %v1776
    %v1778 = vmul.f32 1.0, %v1777
    %v1780 = vrot.slane %v1596, 7
    %v1782 = vmul.f32 %v1771, %v1780
    %v1783 = vmul.f32 %v1765, %v1772
    %v1784 = vadd.f32 %v1782, %v1783
    %v1785 = vtanh.pop %v1784
    %v1786 = vmul.f32 %v1778, %v1785
    %v1787 = vld [vmem:[%s6] sm:$0xff]
    %v1788 = vld [vmem:[%s6 + $0x8] sm:$0xff]
    %v1789 = vld [vmem:[%s6 + $0x10] sm:$0xff]
    %v1790 = vld [vmem:[%s6 + $0x18] sm:$0xff]
    %v1791 = vld [vmem:[%s6 + $0x20] sm:$0xff]
    %v1792 = vld [vmem:[%s6 + $0x28] sm:$0xff]
    %v1793 = vld [vmem:[%s6 + $0x30] sm:$0xff]
    %v1794 = vld [vmem:[%s6 + $0x38] sm:$0xff]
    %v1795 = vld [vmem:[%s6 + $0x40] sm:$0xff]
    %v1796 = vld [vmem:[%s6 + $0x48] sm:$0xff]
    %v1797 = vld [vmem:[%s6 + $0x50] sm:$0xff]
    %v1798 = vld [vmem:[%s6 + $0x58] sm:$0xff]
    %v1799 = vld [vmem:[%s6 + $0x60] sm:$0xff]
    %v1800 = vld [vmem:[%s6 + $0x68] sm:$0xff]
    %v1801 = vld [vmem:[%s6 + $0x70] sm:$0xff]
    %v1802 = vld [vmem:[%s6 + $0x78] sm:$0xff]
    %v1803 = vld [vmem:[%s7] sm:$0x1]
    %v1805 = vrot.slane %v1786, 7
    %1807 = vmatprep.subr.mxu0 0.0
    %1808 = vmatpush1.msra.mxu0 %v1787
    %1809 = vmatprep.subr.mxu0 0.0
    %1810 = vmatpush1.msra.mxu0 %v1788
    %1811 = vmatprep.subr.mxu0 0.0
    %1812 = vmatpush1.msra.mxu0 %v1789
    %1813 = vmatprep.subr.mxu0 0.0
    %1814 = vmatpush1.msra.mxu0 %v1790
    %1815 = vmatprep.subr.mxu0 0.0
    %1816 = vmatpush1.msra.mxu0 %v1791
    %1817 = vmatprep.subr.mxu0 0.0
    %1818 = vmatpush1.msra.mxu0 %v1792
    %1819 = vmatprep.subr.mxu0 0.0
    %1820 = vmatpush1.msra.mxu0 %v1793
    %1821 = vmatprep.subr.mxu0 0.0
    %1822 = vmatpush1.msra.mxu0 %v1794
    %1823 = vmatprep.subr.mxu0 0.0
    %1824 = vmatpush1.msra.mxu0 %v1795
    %1825 = vmatprep.subr.mxu0 0.0
    %1826 = vmatpush1.msra.mxu0 %v1796
    %1827 = vmatprep.subr.mxu0 0.0
    %1828 = vmatpush1.msra.mxu0 %v1797
    %1829 = vmatprep.subr.mxu0 0.0
    %1830 = vmatpush1.msra.mxu0 %v1798
    %1831 = vmatprep.subr.mxu0 0.0
    %1832 = vmatpush1.msra.mxu0 %v1799
    %1833 = vmatprep.subr.mxu0 0.0
    %1834 = vmatpush1.msra.mxu0 %v1800
    %1835 = vmatprep.subr.mxu0 0.0
    %1836 = vmatpush1.msra.mxu0 %v1801
    %1837 = vmatprep.subr.mxu0 0.0
    %1838 = vmatpush1.msra.mxu0 %v1802
    %1839 = vmatprep.subr.mxu0 0.0
    %1840 = vmatpush1.msra.mxu0 0.0
    %1841 = vmatprep.subr.mxu0 0.0
    %1842 = vmatpush1.msra.mxu0 0.0
    %1843 = vmatprep.subr.mxu0 0.0
    %1844 = vmatpush1.msra.mxu0 0.0
    %1845 = vmatprep.subr.mxu0 0.0
    %1846 = vmatpush1.msra.mxu0 0.0
    %1847 = vmatprep.subr.mxu0 0.0
    %1848 = vmatpush1.msra.mxu0 0.0
    %1849 = vmatprep.subr.mxu0 0.0
    %1850 = vmatpush1.msra.mxu0 0.0
    %1851 = vmatprep.subr.mxu0 0.0
    %1852 = vmatpush1.msra.mxu0 0.0
    %1853 = vmatprep.subr.mxu0 0.0
    %1854 = vmatpush1.msra.mxu0 0.0
    %1855 = vmatprep.subr.mxu0 0.0
    %1856 = vmatpush1.msra.mxu0 0.0
    %1857 = vmatprep.subr.mxu0 0.0
    %1858 = vmatpush1.msra.mxu0 0.0
    %1859 = vmatprep.subr.mxu0 0.0
    %1860 = vmatpush1.msra.mxu0 0.0
    %1861 = vmatprep.subr.mxu0 0.0
    %1862 = vmatpush1.msra.mxu0 0.0
    %1863 = vmatprep.subr.mxu0 0.0
    %1864 = vmatpush1.msra.mxu0 0.0
    %1865 = vmatprep.subr.mxu0 0.0
    %1866 = vmatpush1.msra.mxu0 0.0
    %1867 = vmatprep.subr.mxu0 0.0
    %1868 = vmatpush1.msra.mxu0 0.0
    %1869 = vmatprep.subr.mxu0 0.0
    %1870 = vmatpush1.msra.mxu0 0.0
    %1871 = vmatprep.mubr.f32.mxu0 0.0
    %1872 = vmatmul.mubr.f32.gmra.mrb[0].mxu0 %v1805
    %v1873 = vpop.f32.mrb[0].mxu0
    %v1874 = vadd.f32 %v1803, %v1873
    %v1875 = vpop.f32.mrb[0].mxu0
    %1876 = vdwg.mxu0
    %vm1877 = vcmask 16384
    %1878 = vst.msk [vmem:[#allocation5] sm:$0x1] %vm1877, %v1874
    // Predicated region
    $region38: #{tpu_custom_call.1} parent=1 // pred_check
      _
    $region39: #{tpu_custom_call.1} parent=1 // pred_check_branch
      %1880 = sbr.rel (0) target = $region41
    $region40: #{tpu_custom_call.1} parent=1 // pred_region
      %s1882 = ssub.s32 16, 16
      %1883 = vsyncadd [#allocation4], %s1882
      %s1885 = sshll.u32 [#allocation5], 4
      %s1886 = int_to_ptr.vmem [resolvable:$true] %s1885
      %1888 = dma.vmem_to_hbm [thread:$0]  %s1886, 16, %s8, [#allocation4]
    $region41: #{tpu_custom_call.1} parent=1 // pred_fallthru
      _
    // Predicated region
    $region42: #{tpu_custom_call.1} parent=1 // pred_check
      _
    $region43: #{tpu_custom_call.1} parent=1 // pred_check_branch
      %1890 = sbr.rel (0) target = $region45
    $region44: #{tpu_custom_call.1} parent=1 // pred_region
      %1891 = dma.done [#allocation4], 16
    $region45: #{tpu_custom_call.1} parent=1 // pred_fallthru
      _
    %1892 = vsyncpa [#allocation3], 1
    %1893 = vsyncpa [#allocation4], 1

</llo_original>
